<compile_context>
chip_gen: v6e
topology: v6e:2x2x1
jax: 0.10.0
libtpu: 0.0.40
codegen_flags: <defaults>
</compile_context>

<pallas_src>
import numpy as np
import jax
import jax.numpy as jnp
from jax import lax
from jax.experimental import pallas as pl
from jax.experimental.pallas import tpu as pltpu

VOCAB = 10
IN_DIM = 1
HID = 20
OUT_DIM = 5
NUM_LAYERS = 2


def rnn_kernel(ids_ref, emb_ref,
               wih0_ref, whh0_ref, bih0_ref, bhh0_ref,
               wih1_ref, whh1_ref, bih1_ref, bhh1_ref,
               wlin_ref, blin_ref, h0_ref,
               out_ref, hn_ref):
    S = ids_ref.shape[0]

    # --- Prologue: embedding + layer-0 input projection folded into one table ----
    # table[v, :] = emb[v] * W_ih0 + b_ih0 + b_hh0   (biases folded; added once per
    # timestep before tanh, mathematically identical to the PyTorch formulation).
    table = emb_ref[...] * wih0_ref[...] + (bih0_ref[...] + bhh0_ref[...])   # (10, 20)

    ids = ids_ref[...]                                                       # (S, 1) int32
    iota = lax.broadcasted_iota(jnp.int32, (S, VOCAB), 1)                    # (S, 10)
    onehot = (iota == ids).astype(jnp.float32)                               # (S, 10)
    x_pre0 = jnp.dot(onehot, table, preferred_element_type=jnp.float32)      # (S, 20)

    whh0 = whh0_ref[...]
    whh1 = whh1_ref[...]

    # --- Pass 1: layer-0 recurrence, fully unrolled (S is static) ----------------
    h0 = h0_ref[0:1, :]                                                      # (1, 20)
    h0_rows = []
    for t in range(S):
        h0 = jnp.tanh(x_pre0[t:t + 1, :]
                      + jnp.dot(h0, whh0, preferred_element_type=jnp.float32))
        h0_rows.append(h0)
    h0_seq = jnp.concatenate(h0_rows, axis=0)                                # (S, 20)

    # --- Mid: all layer-1 input contributions in one batched MXU op --------------
    x_pre1 = (jnp.dot(h0_seq, wih1_ref[...], preferred_element_type=jnp.float32)
              + (bih1_ref[...] + bhh1_ref[...]))                             # (S, 20)

    # --- Pass 2: layer-1 recurrence, fully unrolled -------------------------------
    h1 = h0_ref[1:2, :]                                                      # (1, 20)
    for t in range(S):
        h1 = jnp.tanh(x_pre1[t:t + 1, :]
                      + jnp.dot(h1, whh1, preferred_element_type=jnp.float32))

    # --- Epilogue: Linear head + LogSoftmax (last dim) ----------------------------
    logits = jnp.dot(h1, wlin_ref[...],
                     preferred_element_type=jnp.float32) + blin_ref[...]     # (1, 5)
    m = jnp.max(logits, axis=-1, keepdims=True)
    lse = m + jnp.log(jnp.sum(jnp.exp(logits - m), axis=-1, keepdims=True))
    out_ref[...] = logits - lse

    # Single full-block store for h_n (avoids two masked partial stores).
    hn_ref[...] = jnp.concatenate([h0, h1], axis=0)                          # (2, 20)


def rnn_forward(ids, params, h0):
    """ids: [S] int32; h0: [2, 1, 20] f32. Returns (logprobs [1,5], h_n [2,1,20])."""
    S = ids.shape[0]
    ids2d = ids.reshape(S, 1).astype(jnp.int32)
    h0_2d = h0.reshape(NUM_LAYERS, HID).astype(jnp.float32)

    inputs = (
        ids2d,
        params["emb"],                      # (10, 1)
        params["wih0T"], params["whh0T"],   # (1, 20), (20, 20)
        params["bih0"], params["bhh0"],     # (1, 20), (1, 20)
        params["wih1T"], params["whh1T"],   # (20, 20), (20, 20)
        params["bih1"], params["bhh1"],     # (1, 20), (1, 20)
        params["wlinT"], params["blin"],    # (20, 5), (1, 5)
        h0_2d,                              # (2, 20)
    )

    vmem = pl.BlockSpec(memory_space=pltpu.MemorySpace.VMEM)
    out, hn = pl.pallas_call(
        rnn_kernel,
        out_shape=(
            jax.ShapeDtypeStruct((1, OUT_DIM), jnp.float32),
            jax.ShapeDtypeStruct((NUM_LAYERS, HID), jnp.float32),
        ),
        in_specs=[vmem] * len(inputs),
        out_specs=(vmem, vmem),
    )(*inputs)
    return out, hn.reshape(NUM_LAYERS, 1, HID)


def init_params(key):
    ks = jax.random.split(key, 12)
    bound = 1.0 / np.sqrt(HID)

    def u(k, shape):
        return jax.random.uniform(k, shape, jnp.float32, -bound, bound)

    emb = jax.random.normal(ks[0], (VOCAB, IN_DIM), jnp.float32)
    emb = emb.at[1].set(0.0)  # padding_idx=1 -> zero row (matches PyTorch init)

    # PyTorch stores weight_ih/hh as (out, in); pre-transpose to (in, out).
    wih0T = u(ks[1], (HID, IN_DIM)).T          # (1, 20)
    whh0T = u(ks[2], (HID, HID)).T             # (20, 20)
    bih0 = u(ks[3], (HID,)).reshape(1, HID)
    bhh0 = u(ks[4], (HID,)).reshape(1, HID)
    wih1T = u(ks[5], (HID, HID)).T             # (20, 20)
    whh1T = u(ks[6], (HID, HID)).T             # (20, 20)
    bih1 = u(ks[7], (HID,)).reshape(1, HID)
    bhh1 = u(ks[8], (HID,)).reshape(1, HID)
    wlinT = u(ks[9], (OUT_DIM, HID)).T         # (20, 5)
    blin = u(ks[10], (OUT_DIM,)).reshape(1, OUT_DIM)

    return dict(emb=emb, wih0T=wih0T, whh0T=whh0T, bih0=bih0, bhh0=bhh0,
                wih1T=wih1T, whh1T=whh1T, bih1=bih1, bhh1=bhh1,
                wlinT=wlinT, blin=blin)


def reference_forward(ids, params, h0):
    """Pure-JAX reference mirroring the PyTorch forward (per-step bias order)."""
    x = params["emb"][ids]                       # (S, 1)
    h0c = h0[0, 0][None, :]
    h1c = h0[1, 0][None, :]
    for t in range(x.shape[0]):
        xt = x[t:t + 1, :]                       # (1, 1)
        h0c = jnp.tanh(xt @ params["wih0T"] + params["bih0"]
                       + h0c @ params["whh0T"] + params["bhh0"])
        h1c = jnp.tanh(h0c @ params["wih1T"] + params["bih1"]
                       + h1c @ params["whh1T"] + params["bhh1"])
    logits = h1c @ params["wlinT"] + params["blin"]
    logp = logits - jax.scipy.special.logsumexp(logits, axis=-1, keepdims=True)
    hn = jnp.stack([h0c, h1c], axis=0)           # (2, 1, 20)
    return logp, hn


if __name__ == "__main__":
    key = jax.random.PRNGKey(0)
    k_param, k_ids, k_h0 = jax.random.split(key, 3)

    params = init_params(k_param)
    seq_len = 8
    ids = jax.random.randint(k_ids, (seq_len,), 0, VOCAB, dtype=jnp.int32)
    # torch.randn(2, 1, 20) inside forward -> deterministic normal here.
    h0 = jax.random.normal(k_h0, (NUM_LAYERS, 1, HID), jnp.float32)

    logp, h_n = rnn_forward(ids, params, h0)
    jax.block_until_ready((logp, h_n))

    ref_logp, ref_hn = reference_forward(ids, params, h0)
    assert logp.shape == (1, OUT_DIM) and h_n.shape == (NUM_LAYERS, 1, HID)
    np.testing.assert_allclose(np.asarray(logp), np.asarray(ref_logp), rtol=1e-5, atol=1e-5)
    np.testing.assert_allclose(np.asarray(h_n), np.asarray(ref_hn), rtol=1e-5, atol=1e-5)

    print("KERNEL_OK")
</pallas_src>

<mosaic_0001>
module attributes {stable_mosaic.version = 11 : i64} {
  func.func @rnn_kernel(%arg0: memref<8x1xi32, #tpu.memory_space<vmem>>, %arg1: memref<10x1xf32, #tpu.memory_space<vmem>>, %arg2: memref<1x20xf32, #tpu.memory_space<vmem>>, %arg3: memref<20x20xf32, #tpu.memory_space<vmem>>, %arg4: memref<1x20xf32, #tpu.memory_space<vmem>>, %arg5: memref<1x20xf32, #tpu.memory_space<vmem>>, %arg6: memref<20x20xf32, #tpu.memory_space<vmem>>, %arg7: memref<20x20xf32, #tpu.memory_space<vmem>>, %arg8: memref<1x20xf32, #tpu.memory_space<vmem>>, %arg9: memref<1x20xf32, #tpu.memory_space<vmem>>, %arg10: memref<20x5xf32, #tpu.memory_space<vmem>>, %arg11: memref<1x5xf32, #tpu.memory_space<vmem>>, %arg12: memref<2x20xf32, #tpu.memory_space<vmem>>, %arg13: memref<1x5xf32, #tpu.memory_space<vmem>>, %arg14: memref<2x20xf32, #tpu.memory_space<vmem>>) attributes {dimension_semantics = [], scalar_prefetch = 0 : i64, scratch_operands = 0 : i64, tpu.core_type = #tpu.core_type<tc>} {
    %c0 = arith.constant 0 : index
    %c0_0 = arith.constant 0 : index
    %0 = vector.load %arg1[%c0, %c0_0] : memref<10x1xf32, #tpu.memory_space<vmem>>, vector<10x1xf32>
    %c0_1 = arith.constant 0 : index
    %c0_2 = arith.constant 0 : index
    %1 = vector.load %arg2[%c0_1, %c0_2] : memref<1x20xf32, #tpu.memory_space<vmem>>, vector<1x20xf32>
    %2 = vector.broadcast %0 : vector<10x1xf32> to vector<10x20xf32>
    %3 = vector.broadcast %1 : vector<1x20xf32> to vector<10x20xf32>
    %4 = arith.mulf %2, %3 : vector<10x20xf32>
    %c0_3 = arith.constant 0 : index
    %c0_4 = arith.constant 0 : index
    %5 = vector.load %arg4[%c0_3, %c0_4] : memref<1x20xf32, #tpu.memory_space<vmem>>, vector<1x20xf32>
    %c0_5 = arith.constant 0 : index
    %c0_6 = arith.constant 0 : index
    %6 = vector.load %arg5[%c0_5, %c0_6] : memref<1x20xf32, #tpu.memory_space<vmem>>, vector<1x20xf32>
    %7 = arith.addf %5, %6 : vector<1x20xf32>
    %8 = vector.broadcast %7 : vector<1x20xf32> to vector<10x20xf32>
    %9 = arith.addf %4, %8 : vector<10x20xf32>
    %c0_7 = arith.constant 0 : index
    %c0_8 = arith.constant 0 : index
    %10 = vector.load %arg0[%c0_7, %c0_8] : memref<8x1xi32, #tpu.memory_space<vmem>>, vector<8x1xi32>
    %11 = tpu.iota {dimensions = array<i32: 1>} : vector<8x10xi32>
    %12 = vector.broadcast %10 : vector<8x1xi32> to vector<8x10xi32>
    %13 = arith.cmpi eq, %11, %12 : vector<8x10xi32>
    %14 = arith.extui %13 : vector<8x10xi1> to vector<8x10xi32>
    %15 = arith.sitofp %14 : vector<8x10xi32> to vector<8x10xf32>
    %cst = arith.constant dense<0.000000e+00> : vector<8x20xf32>
    %16 = tpu.matmul %15, %9, %cst {dimension_numbers = #tpu.dot_dimension_numbers<[1], [0], [0], [1], [0, 0, 1, 1], [], []>} : vector<8x10xf32>, vector<10x20xf32>, vector<8x20xf32> -> vector<8x20xf32>
    %c0_9 = arith.constant 0 : index
    %c0_10 = arith.constant 0 : index
    %17 = vector.load %arg3[%c0_9, %c0_10] : memref<20x20xf32, #tpu.memory_space<vmem>>, vector<20x20xf32>
    %c0_11 = arith.constant 0 : index
    %c0_12 = arith.constant 0 : index
    %18 = vector.load %arg7[%c0_11, %c0_12] : memref<20x20xf32, #tpu.memory_space<vmem>>, vector<20x20xf32>
    %c0_13 = arith.constant 0 : index
    %c0_14 = arith.constant 0 : index
    %19 = vector.load %arg12[%c0_13, %c0_14] : memref<2x20xf32, #tpu.memory_space<vmem>>, vector<1x20xf32>
    %20 = vector.extract_strided_slice %16 {offsets = [0, 0], sizes = [1, 20], strides = [1, 1]} : vector<8x20xf32> to vector<1x20xf32>
    %cst_15 = arith.constant dense<0.000000e+00> : vector<1x20xf32>
    %21 = tpu.matmul %19, %17, %cst_15 {dimension_numbers = #tpu.dot_dimension_numbers<[1], [0], [0], [1], [0, 0, 1, 1], [], []>} : vector<1x20xf32>, vector<20x20xf32>, vector<1x20xf32> -> vector<1x20xf32>
    %22 = arith.addf %20, %21 : vector<1x20xf32>
    %23 = math.tanh %22 : vector<1x20xf32>
    %24 = vector.extract_strided_slice %16 {offsets = [1, 0], sizes = [1, 20], strides = [1, 1]} : vector<8x20xf32> to vector<1x20xf32>
    %cst_16 = arith.constant dense<0.000000e+00> : vector<1x20xf32>
    %25 = tpu.matmul %23, %17, %cst_16 {dimension_numbers = #tpu.dot_dimension_numbers<[1], [0], [0], [1], [0, 0, 1, 1], [], []>} : vector<1x20xf32>, vector<20x20xf32>, vector<1x20xf32> -> vector<1x20xf32>
    %26 = arith.addf %24, %25 : vector<1x20xf32>
    %27 = math.tanh %26 : vector<1x20xf32>
    %28 = vector.extract_strided_slice %16 {offsets = [2, 0], sizes = [1, 20], strides = [1, 1]} : vector<8x20xf32> to vector<1x20xf32>
    %cst_17 = arith.constant dense<0.000000e+00> : vector<1x20xf32>
    %29 = tpu.matmul %27, %17, %cst_17 {dimension_numbers = #tpu.dot_dimension_numbers<[1], [0], [0], [1], [0, 0, 1, 1], [], []>} : vector<1x20xf32>, vector<20x20xf32>, vector<1x20xf32> -> vector<1x20xf32>
    %30 = arith.addf %28, %29 : vector<1x20xf32>
    %31 = math.tanh %30 : vector<1x20xf32>
    %32 = vector.extract_strided_slice %16 {offsets = [3, 0], sizes = [1, 20], strides = [1, 1]} : vector<8x20xf32> to vector<1x20xf32>
    %cst_18 = arith.constant dense<0.000000e+00> : vector<1x20xf32>
    %33 = tpu.matmul %31, %17, %cst_18 {dimension_numbers = #tpu.dot_dimension_numbers<[1], [0], [0], [1], [0, 0, 1, 1], [], []>} : vector<1x20xf32>, vector<20x20xf32>, vector<1x20xf32> -> vector<1x20xf32>
    %34 = arith.addf %32, %33 : vector<1x20xf32>
    %35 = math.tanh %34 : vector<1x20xf32>
    %36 = vector.extract_strided_slice %16 {offsets = [4, 0], sizes = [1, 20], strides = [1, 1]} : vector<8x20xf32> to vector<1x20xf32>
    %cst_19 = arith.constant dense<0.000000e+00> : vector<1x20xf32>
    %37 = tpu.matmul %35, %17, %cst_19 {dimension_numbers = #tpu.dot_dimension_numbers<[1], [0], [0], [1], [0, 0, 1, 1], [], []>} : vector<1x20xf32>, vector<20x20xf32>, vector<1x20xf32> -> vector<1x20xf32>
    %38 = arith.addf %36, %37 : vector<1x20xf32>
    %39 = math.tanh %38 : vector<1x20xf32>
    %40 = vector.extract_strided_slice %16 {offsets = [5, 0], sizes = [1, 20], strides = [1, 1]} : vector<8x20xf32> to vector<1x20xf32>
    %cst_20 = arith.constant dense<0.000000e+00> : vector<1x20xf32>
    %41 = tpu.matmul %39, %17, %cst_20 {dimension_numbers = #tpu.dot_dimension_numbers<[1], [0], [0], [1], [0, 0, 1, 1], [], []>} : vector<1x20xf32>, vector<20x20xf32>, vector<1x20xf32> -> vector<1x20xf32>
    %42 = arith.addf %40, %41 : vector<1x20xf32>
    %43 = math.tanh %42 : vector<1x20xf32>
    %44 = vector.extract_strided_slice %16 {offsets = [6, 0], sizes = [1, 20], strides = [1, 1]} : vector<8x20xf32> to vector<1x20xf32>
    %cst_21 = arith.constant dense<0.000000e+00> : vector<1x20xf32>
    %45 = tpu.matmul %43, %17, %cst_21 {dimension_numbers = #tpu.dot_dimension_numbers<[1], [0], [0], [1], [0, 0, 1, 1], [], []>} : vector<1x20xf32>, vector<20x20xf32>, vector<1x20xf32> -> vector<1x20xf32>
    %46 = arith.addf %44, %45 : vector<1x20xf32>
    %47 = math.tanh %46 : vector<1x20xf32>
    %48 = vector.extract_strided_slice %16 {offsets = [7, 0], sizes = [1, 20], strides = [1, 1]} : vector<8x20xf32> to vector<1x20xf32>
    %cst_22 = arith.constant dense<0.000000e+00> : vector<1x20xf32>
    %49 = tpu.matmul %47, %17, %cst_22 {dimension_numbers = #tpu.dot_dimension_numbers<[1], [0], [0], [1], [0, 0, 1, 1], [], []>} : vector<1x20xf32>, vector<20x20xf32>, vector<1x20xf32> -> vector<1x20xf32>
    %50 = arith.addf %48, %49 : vector<1x20xf32>
    %51 = math.tanh %50 : vector<1x20xf32>
    %52 = tpu.concatenate %23, %27, %31, %35, %39, %43, %47, %51 in 0 : vector<1x20xf32>, vector<1x20xf32>, vector<1x20xf32>, vector<1x20xf32>, vector<1x20xf32>, vector<1x20xf32>, vector<1x20xf32>, vector<1x20xf32> -> vector<8x20xf32>
    %c0_23 = arith.constant 0 : index
    %c0_24 = arith.constant 0 : index
    %53 = vector.load %arg6[%c0_23, %c0_24] : memref<20x20xf32, #tpu.memory_space<vmem>>, vector<20x20xf32>
    %cst_25 = arith.constant dense<0.000000e+00> : vector<8x20xf32>
    %54 = tpu.matmul %52, %53, %cst_25 {dimension_numbers = #tpu.dot_dimension_numbers<[1], [0], [0], [1], [0, 0, 1, 1], [], []>} : vector<8x20xf32>, vector<20x20xf32>, vector<8x20xf32> -> vector<8x20xf32>
    %c0_26 = arith.constant 0 : index
    %c0_27 = arith.constant 0 : index
    %55 = vector.load %arg8[%c0_26, %c0_27] : memref<1x20xf32, #tpu.memory_space<vmem>>, vector<1x20xf32>
    %c0_28 = arith.constant 0 : index
    %c0_29 = arith.constant 0 : index
    %56 = vector.load %arg9[%c0_28, %c0_29] : memref<1x20xf32, #tpu.memory_space<vmem>>, vector<1x20xf32>
    %57 = arith.addf %55, %56 : vector<1x20xf32>
    %58 = vector.broadcast %57 : vector<1x20xf32> to vector<8x20xf32>
    %59 = arith.addf %54, %58 : vector<8x20xf32>
    %c1 = arith.constant 1 : index
    %c0_30 = arith.constant 0 : index
    %60 = vector.load %arg12[%c1, %c0_30] : memref<2x20xf32, #tpu.memory_space<vmem>>, vector<1x20xf32>
    %61 = vector.extract_strided_slice %59 {offsets = [0, 0], sizes = [1, 20], strides = [1, 1]} : vector<8x20xf32> to vector<1x20xf32>
    %cst_31 = arith.constant dense<0.000000e+00> : vector<1x20xf32>
    %62 = tpu.matmul %60, %18, %cst_31 {dimension_numbers = #tpu.dot_dimension_numbers<[1], [0], [0], [1], [0, 0, 1, 1], [], []>} : vector<1x20xf32>, vector<20x20xf32>, vector<1x20xf32> -> vector<1x20xf32>
    %63 = arith.addf %61, %62 : vector<1x20xf32>
    %64 = math.tanh %63 : vector<1x20xf32>
    %65 = vector.extract_strided_slice %59 {offsets = [1, 0], sizes = [1, 20], strides = [1, 1]} : vector<8x20xf32> to vector<1x20xf32>
    %cst_32 = arith.constant dense<0.000000e+00> : vector<1x20xf32>
    %66 = tpu.matmul %64, %18, %cst_32 {dimension_numbers = #tpu.dot_dimension_numbers<[1], [0], [0], [1], [0, 0, 1, 1], [], []>} : vector<1x20xf32>, vector<20x20xf32>, vector<1x20xf32> -> vector<1x20xf32>
    %67 = arith.addf %65, %66 : vector<1x20xf32>
    %68 = math.tanh %67 : vector<1x20xf32>
    %69 = vector.extract_strided_slice %59 {offsets = [2, 0], sizes = [1, 20], strides = [1, 1]} : vector<8x20xf32> to vector<1x20xf32>
    %cst_33 = arith.constant dense<0.000000e+00> : vector<1x20xf32>
    %70 = tpu.matmul %68, %18, %cst_33 {dimension_numbers = #tpu.dot_dimension_numbers<[1], [0], [0], [1], [0, 0, 1, 1], [], []>} : vector<1x20xf32>, vector<20x20xf32>, vector<1x20xf32> -> vector<1x20xf32>
    %71 = arith.addf %69, %70 : vector<1x20xf32>
    %72 = math.tanh %71 : vector<1x20xf32>
    %73 = vector.extract_strided_slice %59 {offsets = [3, 0], sizes = [1, 20], strides = [1, 1]} : vector<8x20xf32> to vector<1x20xf32>
    %cst_34 = arith.constant dense<0.000000e+00> : vector<1x20xf32>
    %74 = tpu.matmul %72, %18, %cst_34 {dimension_numbers = #tpu.dot_dimension_numbers<[1], [0], [0], [1], [0, 0, 1, 1], [], []>} : vector<1x20xf32>, vector<20x20xf32>, vector<1x20xf32> -> vector<1x20xf32>
    %75 = arith.addf %73, %74 : vector<1x20xf32>
    %76 = math.tanh %75 : vector<1x20xf32>
    %77 = vector.extract_strided_slice %59 {offsets = [4, 0], sizes = [1, 20], strides = [1, 1]} : vector<8x20xf32> to vector<1x20xf32>
    %cst_35 = arith.constant dense<0.000000e+00> : vector<1x20xf32>
    %78 = tpu.matmul %76, %18, %cst_35 {dimension_numbers = #tpu.dot_dimension_numbers<[1], [0], [0], [1], [0, 0, 1, 1], [], []>} : vector<1x20xf32>, vector<20x20xf32>, vector<1x20xf32> -> vector<1x20xf32>
    %79 = arith.addf %77, %78 : vector<1x20xf32>
    %80 = math.tanh %79 : vector<1x20xf32>
    %81 = vector.extract_strided_slice %59 {offsets = [5, 0], sizes = [1, 20], strides = [1, 1]} : vector<8x20xf32> to vector<1x20xf32>
    %cst_36 = arith.constant dense<0.000000e+00> : vector<1x20xf32>
    %82 = tpu.matmul %80, %18, %cst_36 {dimension_numbers = #tpu.dot_dimension_numbers<[1], [0], [0], [1], [0, 0, 1, 1], [], []>} : vector<1x20xf32>, vector<20x20xf32>, vector<1x20xf32> -> vector<1x20xf32>
    %83 = arith.addf %81, %82 : vector<1x20xf32>
    %84 = math.tanh %83 : vector<1x20xf32>
    %85 = vector.extract_strided_slice %59 {offsets = [6, 0], sizes = [1, 20], strides = [1, 1]} : vector<8x20xf32> to vector<1x20xf32>
    %cst_37 = arith.constant dense<0.000000e+00> : vector<1x20xf32>
    %86 = tpu.matmul %84, %18, %cst_37 {dimension_numbers = #tpu.dot_dimension_numbers<[1], [0], [0], [1], [0, 0, 1, 1], [], []>} : vector<1x20xf32>, vector<20x20xf32>, vector<1x20xf32> -> vector<1x20xf32>
    %87 = arith.addf %85, %86 : vector<1x20xf32>
    %88 = math.tanh %87 : vector<1x20xf32>
    %89 = vector.extract_strided_slice %59 {offsets = [7, 0], sizes = [1, 20], strides = [1, 1]} : vector<8x20xf32> to vector<1x20xf32>
    %cst_38 = arith.constant dense<0.000000e+00> : vector<1x20xf32>
    %90 = tpu.matmul %88, %18, %cst_38 {dimension_numbers = #tpu.dot_dimension_numbers<[1], [0], [0], [1], [0, 0, 1, 1], [], []>} : vector<1x20xf32>, vector<20x20xf32>, vector<1x20xf32> -> vector<1x20xf32>
    %91 = arith.addf %89, %90 : vector<1x20xf32>
    %92 = math.tanh %91 : vector<1x20xf32>
    %c0_39 = arith.constant 0 : index
    %c0_40 = arith.constant 0 : index
    %93 = vector.load %arg10[%c0_39, %c0_40] : memref<20x5xf32, #tpu.memory_space<vmem>>, vector<20x5xf32>
    %cst_41 = arith.constant dense<0.000000e+00> : vector<1x5xf32>
    %94 = tpu.matmul %92, %93, %cst_41 {dimension_numbers = #tpu.dot_dimension_numbers<[1], [0], [0], [1], [0, 0, 1, 1], [], []>} : vector<1x20xf32>, vector<20x5xf32>, vector<1x5xf32> -> vector<1x5xf32>
    %c0_42 = arith.constant 0 : index
    %c0_43 = arith.constant 0 : index
    %95 = vector.load %arg11[%c0_42, %c0_43] : memref<1x5xf32, #tpu.memory_space<vmem>>, vector<1x5xf32>
    %96 = arith.addf %94, %95 : vector<1x5xf32>
    %cst_44 = arith.constant dense<0xFF800000> : vector<1xf32>
    %97 = vector.multi_reduction <maximumf>, %96, %cst_44 [1] : vector<1x5xf32> to vector<1xf32>
    %98 = vector.shape_cast %97 : vector<1xf32> to vector<1x1xf32>
    %99 = vector.broadcast %98 : vector<1x1xf32> to vector<1x5xf32>
    %100 = arith.subf %96, %99 : vector<1x5xf32>
    %101 = math.exp %100 : vector<1x5xf32>
    %cst_45 = arith.constant dense<0.000000e+00> : vector<1xf32>
    %102 = vector.multi_reduction <add>, %101, %cst_45 [1] : vector<1x5xf32> to vector<1xf32>
    %103 = vector.shape_cast %102 : vector<1xf32> to vector<1x1xf32>
    %104 = math.log %103 : vector<1x1xf32>
    %105 = arith.addf %98, %104 : vector<1x1xf32>
    %106 = vector.broadcast %105 : vector<1x1xf32> to vector<1x5xf32>
    %107 = arith.subf %96, %106 : vector<1x5xf32>
    %c0_46 = arith.constant 0 : index
    %c0_47 = arith.constant 0 : index
    %108 = vector.load %arg13[%c0_46, %c0_47] : memref<1x5xf32, #tpu.memory_space<vmem>>, vector<1x5xf32>
    tpu.vector_store %arg13[%c0_46, %c0_47], %107 {strides = array<i32>} : memref<1x5xf32, #tpu.memory_space<vmem>>, vector<1x5xf32>,
    %109 = tpu.concatenate %51, %92 in 0 : vector<1x20xf32>, vector<1x20xf32> -> vector<2x20xf32>
    %c0_48 = arith.constant 0 : index
    %c0_49 = arith.constant 0 : index
    %110 = vector.load %arg14[%c0_48, %c0_49] : memref<2x20xf32, #tpu.memory_space<vmem>>, vector<2x20xf32>
    tpu.vector_store %arg14[%c0_48, %c0_49], %109 {strides = array<i32>} : memref<2x20xf32, #tpu.memory_space<vmem>>, vector<2x20xf32>,
    return
  }
}

</mosaic_0001>

<llo_original>
// kernel: tpu_custom_call.1
$region0: #{tpu_custom_call.1}
  #allocation0 [shape = 'u32[]', space=smem, size = 0x4, offset = 0x4, fixed_abs, tag = 'smem constant byte address 0x4 - core index']
  #allocation1 [shape = 'u32[144,128]{1,0:T(1,128)}', space=vmem, size = 0x12000, scoped, tag = 'internal scratch']
  %s0 = inlined_call_operand.vmem [shape: s32[8,1], index: 0, kind: input, shape index: {}]
  %s1 = inlined_call_operand.vmem [shape: f32[10,1], index: 1, kind: input, shape index: {}]
  %s2 = inlined_call_operand.vmem [shape: f32[1,20], index: 2, kind: input, shape index: {}]
  %s3 = inlined_call_operand.vmem [shape: f32[20,20], index: 3, kind: input, shape index: {}]
  %s4 = inlined_call_operand.vmem [shape: f32[1,20], index: 4, kind: input, shape index: {}]
  %s5 = inlined_call_operand.vmem [shape: f32[1,20], index: 5, kind: input, shape index: {}]
  %s6 = inlined_call_operand.vmem [shape: f32[20,20], index: 6, kind: input, shape index: {}]
  %s7 = inlined_call_operand.hbm [shape: f32[20,20], index: 7, kind: input, shape index: {}]
  %s8 = inlined_call_operand.vmem [shape: f32[1,20], index: 8, kind: input, shape index: {}]
  %s9 = inlined_call_operand.vmem [shape: f32[1,20], index: 9, kind: input, shape index: {}]
  %s10 = inlined_call_operand.vmem [shape: f32[20,5], index: 10, kind: input, shape index: {}]
  %s11 = inlined_call_operand.vmem [shape: f32[1,5], index: 11, kind: input, shape index: {}]
  %s12 = inlined_call_operand.vmem [shape: f32[2,20], index: 12, kind: input, shape index: {}]
  %s13 = inlined_call_operand.hbm [shape: f32[1,5], index: 13, kind: output, shape index: {0}]
  %s14 = inlined_call_operand.hbm [shape: f32[2,20], index: 14, kind: output, shape index: {1}]
  %15 = xla_tuple %s13, %s14
  %s16 = sld [smem:[#allocation0]]
  $region74: #{tpu_custom_call.1} parent=0
    _
  %s18 = ssub.s32 1, %s16
  %s19 = scalar_select 0, %s18, %s16
  $region1: #{tpu_custom_call.1} parent=0
    #allocation2 [shape = 'u8[12288]{0}', space=vmem, size = 0x3000, scoped, tag = 'input window, operand 7, single buffered']
    #allocation3 [shape = 's32[1]{0}', space=sflag, size = 0x4, scoped, tag = 'scoped memory for tpu_custom_call.1']
    #allocation4 [shape = 's32[1]{0}', space=sflag, size = 0x4, scoped, tag = 'scoped memory for tpu_custom_call.1']
    #allocation5 [shape = 'u8[512]{0}', space=vmem, size = 0x400, scoped, tag = 'output window, operand 0, single buffered']
    #allocation6 [shape = 'u8[1024]{0}', space=vmem, size = 0x400, scoped, tag = 'output window, operand 1, single buffered']
    #allocation7 [shape = 's32[1]{0}', space=sflag, size = 0x4, scoped, tag = 'scoped memory for tpu_custom_call.1']
    %20 = vsyncpa [#allocation3], 0
    %21 = vsyncpa [#allocation4], 0
    %22 = vsyncpa [#allocation7], 0
    // Predicated region
    $region2: #{tpu_custom_call.1} parent=1 // pred_check
      _
    $region3: #{tpu_custom_call.1} parent=1 // pred_check_branch
      %24 = sbr.rel (0) target = $region5
    $region4: #{tpu_custom_call.1} parent=1 // pred_region
      _
    $region5: #{tpu_custom_call.1} parent=1 // pred_fallthru
      _
    // Predicated region
    $region6: #{tpu_custom_call.1} parent=1 // pred_check
      _
    $region7: #{tpu_custom_call.1} parent=1 // pred_check_branch
      %26 = sbr.rel (0) target = $region9
    $region8: #{tpu_custom_call.1} parent=1 // pred_region
      _
    $region9: #{tpu_custom_call.1} parent=1 // pred_fallthru
      _
    // Predicated region
    $region10: #{tpu_custom_call.1} parent=1 // pred_check
      _
    $region11: #{tpu_custom_call.1} parent=1 // pred_check_branch
      %28 = sbr.rel (0) target = $region13
    $region12: #{tpu_custom_call.1} parent=1 // pred_region
      _
    $region13: #{tpu_custom_call.1} parent=1 // pred_fallthru
      _
    // Predicated region
    $region14: #{tpu_custom_call.1} parent=1 // pred_check
      _
    $region15: #{tpu_custom_call.1} parent=1 // pred_check_branch
      %30 = sbr.rel (0) target = $region17
    $region16: #{tpu_custom_call.1} parent=1 // pred_region
      _
    $region17: #{tpu_custom_call.1} parent=1 // pred_fallthru
      _
    // Predicated region
    $region18: #{tpu_custom_call.1} parent=1 // pred_check
      _
    $region19: #{tpu_custom_call.1} parent=1 // pred_check_branch
      %32 = sbr.rel (0) target = $region21
    $region20: #{tpu_custom_call.1} parent=1 // pred_region
      _
    $region21: #{tpu_custom_call.1} parent=1 // pred_fallthru
      _
    // Predicated region
    $region22: #{tpu_custom_call.1} parent=1 // pred_check
      _
    $region23: #{tpu_custom_call.1} parent=1 // pred_check_branch
      %34 = sbr.rel (0) target = $region25
    $region24: #{tpu_custom_call.1} parent=1 // pred_region
      _
    $region25: #{tpu_custom_call.1} parent=1 // pred_fallthru
      _
    // Predicated region
    $region26: #{tpu_custom_call.1} parent=1 // pred_check
      _
    $region27: #{tpu_custom_call.1} parent=1 // pred_check_branch
      %36 = sbr.rel (0) target = $region29
    $region28: #{tpu_custom_call.1} parent=1 // pred_region
      _
    $region29: #{tpu_custom_call.1} parent=1 // pred_fallthru
      _
    // Predicated region
    $region30: #{tpu_custom_call.1} parent=1 // pred_check
      _
    $region31: #{tpu_custom_call.1} parent=1 // pred_check_branch
      %38 = sbr.rel (0) target = $region33
    $region32: #{tpu_custom_call.1} parent=1 // pred_region
      %s40 = ssub.s32 384, 384
      %41 = vsyncadd [#allocation3], %s40
      %s42 = sshll.u32 [#allocation2], 4
      %s43 = int_to_ptr.vmem [resolvable:$true] %s42
      %48 = dma.hbm_to_vmem [thread:$0]  %s7, 384, %s43, [#allocation3], 128, 128, 8
    $region33: #{tpu_custom_call.1} parent=1 // pred_fallthru
      _
    // Predicated region
    $region34: #{tpu_custom_call.1} parent=1 // pred_check
      _
    $region35: #{tpu_custom_call.1} parent=1 // pred_check_branch
      %50 = sbr.rel (0) target = $region37
    $region36: #{tpu_custom_call.1} parent=1 // pred_region
      _
    $region37: #{tpu_custom_call.1} parent=1 // pred_fallthru
      _
    // Predicated region
    $region38: #{tpu_custom_call.1} parent=1 // pred_check
      _
    $region39: #{tpu_custom_call.1} parent=1 // pred_check_branch
      %52 = sbr.rel (0) target = $region41
    $region40: #{tpu_custom_call.1} parent=1 // pred_region
      _
    $region41: #{tpu_custom_call.1} parent=1 // pred_fallthru
      _
    // Predicated region
    $region42: #{tpu_custom_call.1} parent=1 // pred_check
      _
    $region43: #{tpu_custom_call.1} parent=1 // pred_check_branch
      %54 = sbr.rel (0) target = $region45
    $region44: #{tpu_custom_call.1} parent=1 // pred_region
      _
    $region45: #{tpu_custom_call.1} parent=1 // pred_fallthru
      _
    // Predicated region
    $region46: #{tpu_custom_call.1} parent=1 // pred_check
      _
    $region47: #{tpu_custom_call.1} parent=1 // pred_check_branch
      %56 = sbr.rel (0) target = $region49
    $region48: #{tpu_custom_call.1} parent=1 // pred_region
      _
    $region49: #{tpu_custom_call.1} parent=1 // pred_fallthru
      _
    // Predicated region
    $region50: #{tpu_custom_call.1} parent=1 // pred_check
      _
    $region51: #{tpu_custom_call.1} parent=1 // pred_check_branch
      %58 = sbr.rel (0) target = $region53
    $region52: #{tpu_custom_call.1} parent=1 // pred_region
      _
    $region53: #{tpu_custom_call.1} parent=1 // pred_fallthru
      _
    // Predicated region
    $region54: #{tpu_custom_call.1} parent=1 // pred_check
      _
    $region55: #{tpu_custom_call.1} parent=1 // pred_check_branch
      %60 = sbr.rel (0) target = $region57
    $region56: #{tpu_custom_call.1} parent=1 // pred_region
      %61 = dma.done [#allocation3], 384
    $region57: #{tpu_custom_call.1} parent=1 // pred_fallthru
      _
    %v62 = vld [vmem:[%s1] sm:$0xff]
    %v63 = vld [vmem:[%s1 + $0x8] sm:$0x3]
    %v64 = vld [vmem:[%s2] sm:$0x1]
    %66 = vset.pattern.permute.xlu0 0
    %67 = vperm.xlu0 %66, %v62
    %v68 = vpop.permute.xlu0 %67
    %71 = vset.pattern.permute.xlu0 0
    %72 = vperm.xlu0 %71, %v63
    %v73 = vpop.permute.xlu0 %72
    %v76 = vlaneseq
    %v77 = vshrl.u32 %v76, 7
    %v78 = vsub.s32 0, %v77
    %v79 = vrot.slane %v64, %v78
    %v81 = vmul.f32 %v68, %v79
    %v82 = vmul.f32 %v73, %v79
    %v83 = vld [vmem:[%s4] sm:$0x1]
    %v84 = vld [vmem:[%s5] sm:$0x1]
    %v85 = vadd.f32 %v83, %v84
    %v87 = vlaneseq
    %v88 = vshrl.u32 %v87, 7
    %v89 = vsub.s32 0, %v88
    %v90 = vrot.slane %v85, %v89
    %v92 = vadd.f32 %v81, %v90
    %v93 = vadd.f32 %v82, %v90
    %v94 = vld [vmem:[%s0] sm:$0xff]
    %v95 = vlaneseq
    %v96 = vand.u32 %v95, 127
    %97 = vset.pattern.permute.xlu0 0
    %98 = vperm.xlu0 %97, %v94
    %v99 = vpop.permute.xlu0 %98
    %vm100 = vcmp.eq.s32.totalorder %v96, %v99
    %v101 = vsel %vm100, 1, 0
    %v102 = vcvt.s32.f32 %v101
    %vm103 = vcmask 80896
    %v105 = vsel %vm103, %v102, 0
    %vm107 = vcmask 1041408
    %v109 = vsel %vm107, %v93, 0
    %111 = vmatprep.subr.mxu0 0.0
    %112 = vmatpush1.msra.mxu0 0.0
    %113 = vmatprep.subr.mxu0 0.0
    %114 = vmatpush1.msra.mxu0 0.0
    %115 = vmatprep.subr.mxu0 0.0
    %116 = vmatpush1.msra.mxu0 0.0
    %117 = vmatprep.subr.mxu0 0.0
    %118 = vmatpush1.msra.mxu0 0.0
    %119 = vmatprep.subr.mxu0 0.0
    %120 = vmatpush1.msra.mxu0 0.0
    %121 = vmatprep.subr.mxu0 0.0
    %122 = vmatpush1.msra.mxu0 0.0
    %123 = vmatprep.subr.mxu0 0.0
    %124 = vmatpush1.msra.mxu0 0.0
    %125 = vmatprep.subr.mxu0 0.0
    %126 = vmatpush1.msra.mxu0 0.0
    %127 = vmatprep.subr.mxu0 0.0
    %128 = vmatpush1.msra.mxu0 0.0
    %129 = vmatprep.subr.mxu0 0.0
    %130 = vmatpush1.msra.mxu0 0.0
    %131 = vmatprep.subr.mxu0 0.0
    %132 = vmatpush1.msra.mxu0 0.0
    %133 = vmatprep.subr.mxu0 0.0
    %134 = vmatpush1.msra.mxu0 0.0
    %135 = vmatprep.subr.mxu0 0.0
    %136 = vmatpush1.msra.mxu0 0.0
    %137 = vmatprep.subr.mxu0 0.0
    %138 = vmatpush1.msra.mxu0 0.0
    %139 = vmatprep.subr.mxu0 0.0
    %140 = vmatpush1.msra.mxu0 %v109
    %141 = vmatprep.subr.mxu0 0.0
    %142 = vmatpush1.msra.mxu0 %v92
    %143 = vmatprep.subr.mxu0 0.0
    %144 = vmatpush2.msra.mxu0 0.0
    %145 = vmatprep.subr.mxu0 0.0
    %146 = vmatpush2.msra.mxu0 0.0
    %147 = vmatprep.subr.mxu0 0.0
    %148 = vmatpush2.msra.mxu0 0.0
    %149 = vmatprep.subr.mxu0 0.0
    %150 = vmatpush2.msra.mxu0 0.0
    %151 = vmatprep.subr.mxu0 0.0
    %152 = vmatpush2.msra.mxu0 0.0
    %153 = vmatprep.subr.mxu0 0.0
    %154 = vmatpush2.msra.mxu0 0.0
    %155 = vmatprep.subr.mxu0 0.0
    %156 = vmatpush2.msra.mxu0 0.0
    %157 = vmatprep.subr.mxu0 0.0
    %158 = vmatpush2.msra.mxu0 0.0
    %159 = vmatprep.subr.mxu0 0.0
    %160 = vmatpush2.msra.mxu0 0.0
    %161 = vmatprep.subr.mxu0 0.0
    %162 = vmatpush2.msra.mxu0 0.0
    %163 = vmatprep.subr.mxu0 0.0
    %164 = vmatpush2.msra.mxu0 0.0
    %165 = vmatprep.subr.mxu0 0.0
    %166 = vmatpush2.msra.mxu0 0.0
    %167 = vmatprep.subr.mxu0 0.0
    %168 = vmatpush2.msra.mxu0 0.0
    %169 = vmatprep.subr.mxu0 0.0
    %170 = vmatpush2.msra.mxu0 0.0
    %171 = vmatprep.subr.mxu0 0.0
    %172 = vmatpush2.msra.mxu0 0.0
    %173 = vmatprep.subr.mxu0 0.0
    %174 = vmatpush2.msra.mxu0 0.0
    %175 = vmatprep.mubr.f32.mxu0 0.0
    %176 = vmatmul.mubr.f32.gmra.mxu0 %v105
    %v177 = vpop.f32.mrf.mxu0
    %v178 = vadd.f32 0.0, %v177
    %v179 = vpop.f32.mrf.mxu0
    %180 = vdwg.mxu0
    %v181 = vld [vmem:[%s3] sm:$0xff]
    %v182 = vld [vmem:[%s3 + $0x8] sm:$0xff]
    %v183 = vld [vmem:[%s3 + $0x10] sm:$0xf]
    %v184 = vld [vmem:[#allocation2] sm:$0xff]
    %v185 = vld [vmem:[#allocation2 + $0x8] sm:$0xff]
    %v186 = vld [vmem:[#allocation2 + $0x10] sm:$0xf]
    %v187 = vld [vmem:[%s12] sm:$0x1]
    %vm188 = vcmask 162816
    %v190 = vsel %vm188, %v187, 0
    %vm192 = vcmask 1043456
    %v194 = vsel %vm192, %v183, 0
    %196 = vmatprep.subr.mxu0 0.0
    %197 = vmatpush1.msra.mxu0 0.0
    %198 = vmatprep.subr.mxu0 0.0
    %199 = vmatpush1.msra.mxu0 0.0
    %200 = vmatprep.subr.mxu0 0.0
    %201 = vmatpush1.msra.mxu0 0.0
    %202 = vmatprep.subr.mxu0 0.0
    %203 = vmatpush1.msra.mxu0 0.0
    %204 = vmatprep.subr.mxu0 0.0
    %205 = vmatpush1.msra.mxu0 0.0
    %206 = vmatprep.subr.mxu0 0.0
    %207 = vmatpush1.msra.mxu0 0.0
    %208 = vmatprep.subr.mxu0 0.0
    %209 = vmatpush1.msra.mxu0 0.0
    %210 = vmatprep.subr.mxu0 0.0
    %211 = vmatpush1.msra.mxu0 0.0
    %212 = vmatprep.subr.mxu0 0.0
    %213 = vmatpush1.msra.mxu0 0.0
    %214 = vmatprep.subr.mxu0 0.0
    %215 = vmatpush1.msra.mxu0 0.0
    %216 = vmatprep.subr.mxu0 0.0
    %217 = vmatpush1.msra.mxu0 0.0
    %218 = vmatprep.subr.mxu0 0.0
    %219 = vmatpush1.msra.mxu0 0.0
    %220 = vmatprep.subr.mxu0 0.0
    %221 = vmatpush1.msra.mxu0 0.0
    %222 = vmatprep.subr.mxu0 0.0
    %223 = vmatpush1.msra.mxu0 %v194
    %224 = vmatprep.subr.mxu0 0.0
    %225 = vmatpush1.msra.mxu0 %v182
    %226 = vmatprep.subr.mxu0 0.0
    %227 = vmatpush1.msra.mxu0 %v181
    %228 = vmatprep.subr.mxu0 0.0
    %229 = vmatpush2.msra.mxu0 0.0
    %230 = vmatprep.subr.mxu0 0.0
    %231 = vmatpush2.msra.mxu0 0.0
    %232 = vmatprep.subr.mxu0 0.0
    %233 = vmatpush2.msra.mxu0 0.0
    %234 = vmatprep.subr.mxu0 0.0
    %235 = vmatpush2.msra.mxu0 0.0
    %236 = vmatprep.subr.mxu0 0.0
    %237 = vmatpush2.msra.mxu0 0.0
    %238 = vmatprep.subr.mxu0 0.0
    %239 = vmatpush2.msra.mxu0 0.0
    %240 = vmatprep.subr.mxu0 0.0
    %241 = vmatpush2.msra.mxu0 0.0
    %242 = vmatprep.subr.mxu0 0.0
    %243 = vmatpush2.msra.mxu0 0.0
    %244 = vmatprep.subr.mxu0 0.0
    %245 = vmatpush2.msra.mxu0 0.0
    %246 = vmatprep.subr.mxu0 0.0
    %247 = vmatpush2.msra.mxu0 0.0
    %248 = vmatprep.subr.mxu0 0.0
    %249 = vmatpush2.msra.mxu0 0.0
    %250 = vmatprep.subr.mxu0 0.0
    %251 = vmatpush2.msra.mxu0 0.0
    %252 = vmatprep.subr.mxu0 0.0
    %253 = vmatpush2.msra.mxu0 0.0
    %254 = vmatprep.subr.mxu0 0.0
    %255 = vmatpush2.msra.mxu0 0.0
    %256 = vmatprep.subr.mxu0 0.0
    %257 = vmatpush2.msra.mxu0 0.0
    %258 = vmatprep.subr.mxu0 0.0
    %259 = vmatpush2.msra.mxu0 0.0
    %260 = vmatprep.mubr.f32.mxu0 0.0
    %261 = vmatmul.mubr.f32.gmra.mxu0 %v190
    %v262 = vpop.f32.mrf.mxu0
    %v263 = vadd.f32 0.0, %v262
    %v264 = vpop.f32.mrf.mxu0
    %265 = vdwg.mxu0
    %v266 = vadd.f32 %v178, %v263
    %v267 = vtanh.pop %v266
    %v269 = vsel %vm188, %v267, 0
    %271 = vmatprep.subr.mxu0 0.0
    %272 = vmatpush1.msra.mxu0 0.0
    %273 = vmatprep.subr.mxu0 0.0
    %274 = vmatpush1.msra.mxu0 0.0
    %275 = vmatprep.subr.mxu0 0.0
    %276 = vmatpush1.msra.mxu0 0.0
    %277 = vmatprep.subr.mxu0 0.0
    %278 = vmatpush1.msra.mxu0 0.0
    %279 = vmatprep.subr.mxu0 0.0
    %280 = vmatpush1.msra.mxu0 0.0
    %281 = vmatprep.subr.mxu0 0.0
    %282 = vmatpush1.msra.mxu0 0.0
    %283 = vmatprep.subr.mxu0 0.0
    %284 = vmatpush1.msra.mxu0 0.0
    %285 = vmatprep.subr.mxu0 0.0
    %286 = vmatpush1.msra.mxu0 0.0
    %287 = vmatprep.subr.mxu0 0.0
    %288 = vmatpush1.msra.mxu0 0.0
    %289 = vmatprep.subr.mxu0 0.0
    %290 = vmatpush1.msra.mxu0 0.0
    %291 = vmatprep.subr.mxu0 0.0
    %292 = vmatpush1.msra.mxu0 0.0
    %293 = vmatprep.subr.mxu0 0.0
    %294 = vmatpush1.msra.mxu0 0.0
    %295 = vmatprep.subr.mxu0 0.0
    %296 = vmatpush1.msra.mxu0 0.0
    %297 = vmatprep.subr.mxu0 0.0
    %298 = vmatpush1.msra.mxu0 %v194
    %299 = vmatprep.subr.mxu0 0.0
    %300 = vmatpush1.msra.mxu0 %v182
    %301 = vmatprep.subr.mxu0 0.0
    %302 = vmatpush1.msra.mxu0 %v181
    %303 = vmatprep.subr.mxu0 0.0
    %304 = vmatpush2.msra.mxu0 0.0
    %305 = vmatprep.subr.mxu0 0.0
    %306 = vmatpush2.msra.mxu0 0.0
    %307 = vmatprep.subr.mxu0 0.0
    %308 = vmatpush2.msra.mxu0 0.0
    %309 = vmatprep.subr.mxu0 0.0
    %310 = vmatpush2.msra.mxu0 0.0
    %311 = vmatprep.subr.mxu0 0.0
    %312 = vmatpush2.msra.mxu0 0.0
    %313 = vmatprep.subr.mxu0 0.0
    %314 = vmatpush2.msra.mxu0 0.0
    %315 = vmatprep.subr.mxu0 0.0
    %316 = vmatpush2.msra.mxu0 0.0
    %317 = vmatprep.subr.mxu0 0.0
    %318 = vmatpush2.msra.mxu0 0.0
    %319 = vmatprep.subr.mxu0 0.0
    %320 = vmatpush2.msra.mxu0 0.0
    %321 = vmatprep.subr.mxu0 0.0
    %322 = vmatpush2.msra.mxu0 0.0
    %323 = vmatprep.subr.mxu0 0.0
    %324 = vmatpush2.msra.mxu0 0.0
    %325 = vmatprep.subr.mxu0 0.0
    %326 = vmatpush2.msra.mxu0 0.0
    %327 = vmatprep.subr.mxu0 0.0
    %328 = vmatpush2.msra.mxu0 0.0
    %329 = vmatprep.subr.mxu0 0.0
    %330 = vmatpush2.msra.mxu0 0.0
    %331 = vmatprep.subr.mxu0 0.0
    %332 = vmatpush2.msra.mxu0 0.0
    %333 = vmatprep.subr.mxu0 0.0
    %334 = vmatpush2.msra.mxu0 0.0
    %335 = vmatprep.mubr.f32.mxu0 0.0
    %336 = vmatmul.mubr.f32.gmra.mxu0 %v269
    %v337 = vpop.f32.mrf.mxu0
    %v338 = vadd.f32 0.0, %v337
    %v339 = vpop.f32.mrf.mxu0
    %340 = vdwg.mxu0
    %v342 = vrot.slane %v338, 7
    %v344 = vadd.f32 %v178, %v342
    %v345 = vtanh.pop %v344
    %v347 = vrot.slane %v345, 1
    %v348 = vsel %vm188, %v347, 0
    %350 = vmatprep.subr.mxu0 0.0
    %351 = vmatpush1.msra.mxu0 0.0
    %352 = vmatprep.subr.mxu0 0.0
    %353 = vmatpush1.msra.mxu0 0.0
    %354 = vmatprep.subr.mxu0 0.0
    %355 = vmatpush1.msra.mxu0 0.0
    %356 = vmatprep.subr.mxu0 0.0
    %357 = vmatpush1.msra.mxu0 0.0
    %358 = vmatprep.subr.mxu0 0.0
    %359 = vmatpush1.msra.mxu0 0.0
    %360 = vmatprep.subr.mxu0 0.0
    %361 = vmatpush1.msra.mxu0 0.0
    %362 = vmatprep.subr.mxu0 0.0
    %363 = vmatpush1.msra.mxu0 0.0
    %364 = vmatprep.subr.mxu0 0.0
    %365 = vmatpush1.msra.mxu0 0.0
    %366 = vmatprep.subr.mxu0 0.0
    %367 = vmatpush1.msra.mxu0 0.0
    %368 = vmatprep.subr.mxu0 0.0
    %369 = vmatpush1.msra.mxu0 0.0
    %370 = vmatprep.subr.mxu0 0.0
    %371 = vmatpush1.msra.mxu0 0.0
    %372 = vmatprep.subr.mxu0 0.0
    %373 = vmatpush1.msra.mxu0 0.0
    %374 = vmatprep.subr.mxu0 0.0
    %375 = vmatpush1.msra.mxu0 0.0
    %376 = vmatprep.subr.mxu0 0.0
    %377 = vmatpush1.msra.mxu0 %v194
    %378 = vmatprep.subr.mxu0 0.0
    %379 = vmatpush1.msra.mxu0 %v182
    %380 = vmatprep.subr.mxu0 0.0
    %381 = vmatpush1.msra.mxu0 %v181
    %382 = vmatprep.subr.mxu0 0.0
    %383 = vmatpush2.msra.mxu0 0.0
    %384 = vmatprep.subr.mxu0 0.0
    %385 = vmatpush2.msra.mxu0 0.0
    %386 = vmatprep.subr.mxu0 0.0
    %387 = vmatpush2.msra.mxu0 0.0
    %388 = vmatprep.subr.mxu0 0.0
    %389 = vmatpush2.msra.mxu0 0.0
    %390 = vmatprep.subr.mxu0 0.0
    %391 = vmatpush2.msra.mxu0 0.0
    %392 = vmatprep.subr.mxu0 0.0
    %393 = vmatpush2.msra.mxu0 0.0
    %394 = vmatprep.subr.mxu0 0.0
    %395 = vmatpush2.msra.mxu0 0.0
    %396 = vmatprep.subr.mxu0 0.0
    %397 = vmatpush2.msra.mxu0 0.0
    %398 = vmatprep.subr.mxu0 0.0
    %399 = vmatpush2.msra.mxu0 0.0
    %400 = vmatprep.subr.mxu0 0.0
    %401 = vmatpush2.msra.mxu0 0.0
    %402 = vmatprep.subr.mxu0 0.0
    %403 = vmatpush2.msra.mxu0 0.0
    %404 = vmatprep.subr.mxu0 0.0
    %405 = vmatpush2.msra.mxu0 0.0
    %406 = vmatprep.subr.mxu0 0.0
    %407 = vmatpush2.msra.mxu0 0.0
    %408 = vmatprep.subr.mxu0 0.0
    %409 = vmatpush2.msra.mxu0 0.0
    %410 = vmatprep.subr.mxu0 0.0
    %411 = vmatpush2.msra.mxu0 0.0
    %412 = vmatprep.subr.mxu0 0.0
    %413 = vmatpush2.msra.mxu0 0.0
    %414 = vmatprep.mubr.f32.mxu0 0.0
    %415 = vmatmul.mubr.f32.gmra.mxu0 %v348
    %v416 = vpop.f32.mrf.mxu0
    %v417 = vadd.f32 0.0, %v416
    %v418 = vpop.f32.mrf.mxu0
    %419 = vdwg.mxu0
    %v421 = vrot.slane %v417, 6
    %v423 = vadd.f32 %v178, %v421
    %v424 = vtanh.pop %v423
    %v426 = vrot.slane %v424, 2
    %v427 = vsel %vm188, %v426, 0
    %429 = vmatprep.subr.mxu0 0.0
    %430 = vmatpush1.msra.mxu0 0.0
    %431 = vmatprep.subr.mxu0 0.0
    %432 = vmatpush1.msra.mxu0 0.0
    %433 = vmatprep.subr.mxu0 0.0
    %434 = vmatpush1.msra.mxu0 0.0
    %435 = vmatprep.subr.mxu0 0.0
    %436 = vmatpush1.msra.mxu0 0.0
    %437 = vmatprep.subr.mxu0 0.0
    %438 = vmatpush1.msra.mxu0 0.0
    %439 = vmatprep.subr.mxu0 0.0
    %440 = vmatpush1.msra.mxu0 0.0
    %441 = vmatprep.subr.mxu0 0.0
    %442 = vmatpush1.msra.mxu0 0.0
    %443 = vmatprep.subr.mxu0 0.0
    %444 = vmatpush1.msra.mxu0 0.0
    %445 = vmatprep.subr.mxu0 0.0
    %446 = vmatpush1.msra.mxu0 0.0
    %447 = vmatprep.subr.mxu0 0.0
    %448 = vmatpush1.msra.mxu0 0.0
    %449 = vmatprep.subr.mxu0 0.0
    %450 = vmatpush1.msra.mxu0 0.0
    %451 = vmatprep.subr.mxu0 0.0
    %452 = vmatpush1.msra.mxu0 0.0
    %453 = vmatprep.subr.mxu0 0.0
    %454 = vmatpush1.msra.mxu0 0.0
    %455 = vmatprep.subr.mxu0 0.0
    %456 = vmatpush1.msra.mxu0 %v194
    %457 = vmatprep.subr.mxu0 0.0
    %458 = vmatpush1.msra.mxu0 %v182
    %459 = vmatprep.subr.mxu0 0.0
    %460 = vmatpush1.msra.mxu0 %v181
    %461 = vmatprep.subr.mxu0 0.0
    %462 = vmatpush2.msra.mxu0 0.0
    %463 = vmatprep.subr.mxu0 0.0
    %464 = vmatpush2.msra.mxu0 0.0
    %465 = vmatprep.subr.mxu0 0.0
    %466 = vmatpush2.msra.mxu0 0.0
    %467 = vmatprep.subr.mxu0 0.0
    %468 = vmatpush2.msra.mxu0 0.0
    %469 = vmatprep.subr.mxu0 0.0
    %470 = vmatpush2.msra.mxu0 0.0
    %471 = vmatprep.subr.mxu0 0.0
    %472 = vmatpush2.msra.mxu0 0.0
    %473 = vmatprep.subr.mxu0 0.0
    %474 = vmatpush2.msra.mxu0 0.0
    %475 = vmatprep.subr.mxu0 0.0
    %476 = vmatpush2.msra.mxu0 0.0
    %477 = vmatprep.subr.mxu0 0.0
    %478 = vmatpush2.msra.mxu0 0.0
    %479 = vmatprep.subr.mxu0 0.0
    %480 = vmatpush2.msra.mxu0 0.0
    %481 = vmatprep.subr.mxu0 0.0
    %482 = vmatpush2.msra.mxu0 0.0
    %483 = vmatprep.subr.mxu0 0.0
    %484 = vmatpush2.msra.mxu0 0.0
    %485 = vmatprep.subr.mxu0 0.0
    %486 = vmatpush2.msra.mxu0 0.0
    %487 = vmatprep.subr.mxu0 0.0
    %488 = vmatpush2.msra.mxu0 0.0
    %489 = vmatprep.subr.mxu0 0.0
    %490 = vmatpush2.msra.mxu0 0.0
    %491 = vmatprep.subr.mxu0 0.0
    %492 = vmatpush2.msra.mxu0 0.0
    %493 = vmatprep.mubr.f32.mxu0 0.0
    %494 = vmatmul.mubr.f32.gmra.mxu0 %v427
    %v495 = vpop.f32.mrf.mxu0
    %v496 = vadd.f32 0.0, %v495
    %v497 = vpop.f32.mrf.mxu0
    %498 = vdwg.mxu0
    %v500 = vrot.slane %v496, 5
    %v502 = vadd.f32 %v178, %v500
    %v503 = vtanh.pop %v502
    %v505 = vrot.slane %v503, 3
    %v506 = vsel %vm188, %v505, 0
    %508 = vmatprep.subr.mxu0 0.0
    %509 = vmatpush1.msra.mxu0 0.0
    %510 = vmatprep.subr.mxu0 0.0
    %511 = vmatpush1.msra.mxu0 0.0
    %512 = vmatprep.subr.mxu0 0.0
    %513 = vmatpush1.msra.mxu0 0.0
    %514 = vmatprep.subr.mxu0 0.0
    %515 = vmatpush1.msra.mxu0 0.0
    %516 = vmatprep.subr.mxu0 0.0
    %517 = vmatpush1.msra.mxu0 0.0
    %518 = vmatprep.subr.mxu0 0.0
    %519 = vmatpush1.msra.mxu0 0.0
    %520 = vmatprep.subr.mxu0 0.0
    %521 = vmatpush1.msra.mxu0 0.0
    %522 = vmatprep.subr.mxu0 0.0
    %523 = vmatpush1.msra.mxu0 0.0
    %524 = vmatprep.subr.mxu0 0.0
    %525 = vmatpush1.msra.mxu0 0.0
    %526 = vmatprep.subr.mxu0 0.0
    %527 = vmatpush1.msra.mxu0 0.0
    %528 = vmatprep.subr.mxu0 0.0
    %529 = vmatpush1.msra.mxu0 0.0
    %530 = vmatprep.subr.mxu0 0.0
    %531 = vmatpush1.msra.mxu0 0.0
    %532 = vmatprep.subr.mxu0 0.0
    %533 = vmatpush1.msra.mxu0 0.0
    %534 = vmatprep.subr.mxu0 0.0
    %535 = vmatpush1.msra.mxu0 %v194
    %536 = vmatprep.subr.mxu0 0.0
    %537 = vmatpush1.msra.mxu0 %v182
    %538 = vmatprep.subr.mxu0 0.0
    %539 = vmatpush1.msra.mxu0 %v181
    %540 = vmatprep.subr.mxu0 0.0
    %541 = vmatpush2.msra.mxu0 0.0
    %542 = vmatprep.subr.mxu0 0.0
    %543 = vmatpush2.msra.mxu0 0.0
    %544 = vmatprep.subr.mxu0 0.0
    %545 = vmatpush2.msra.mxu0 0.0
    %546 = vmatprep.subr.mxu0 0.0
    %547 = vmatpush2.msra.mxu0 0.0
    %548 = vmatprep.subr.mxu0 0.0
    %549 = vmatpush2.msra.mxu0 0.0
    %550 = vmatprep.subr.mxu0 0.0
    %551 = vmatpush2.msra.mxu0 0.0
    %552 = vmatprep.subr.mxu0 0.0
    %553 = vmatpush2.msra.mxu0 0.0
    %554 = vmatprep.subr.mxu0 0.0
    %555 = vmatpush2.msra.mxu0 0.0
    %556 = vmatprep.subr.mxu0 0.0
    %557 = vmatpush2.msra.mxu0 0.0
    %558 = vmatprep.subr.mxu0 0.0
    %559 = vmatpush2.msra.mxu0 0.0
    %560 = vmatprep.subr.mxu0 0.0
    %561 = vmatpush2.msra.mxu0 0.0
    %562 = vmatprep.subr.mxu0 0.0
    %563 = vmatpush2.msra.mxu0 0.0
    %564 = vmatprep.subr.mxu0 0.0
    %565 = vmatpush2.msra.mxu0 0.0
    %566 = vmatprep.subr.mxu0 0.0
    %567 = vmatpush2.msra.mxu0 0.0
    %568 = vmatprep.subr.mxu0 0.0
    %569 = vmatpush2.msra.mxu0 0.0
    %570 = vmatprep.subr.mxu0 0.0
    %571 = vmatpush2.msra.mxu0 0.0
    %572 = vmatprep.mubr.f32.mxu0 0.0
    %573 = vmatmul.mubr.f32.gmra.mxu0 %v506
    %v574 = vpop.f32.mrf.mxu0
    %v575 = vadd.f32 0.0, %v574
    %v576 = vpop.f32.mrf.mxu0
    %577 = vdwg.mxu0
    %v579 = vrot.slane %v575, 4
    %v581 = vadd.f32 %v178, %v579
    %v582 = vtanh.pop %v581
    %v584 = vrot.slane %v582, 4
    %v585 = vsel %vm188, %v584, 0
    %587 = vmatprep.subr.mxu0 0.0
    %588 = vmatpush1.msra.mxu0 0.0
    %589 = vmatprep.subr.mxu0 0.0
    %590 = vmatpush1.msra.mxu0 0.0
    %591 = vmatprep.subr.mxu0 0.0
    %592 = vmatpush1.msra.mxu0 0.0
    %593 = vmatprep.subr.mxu0 0.0
    %594 = vmatpush1.msra.mxu0 0.0
    %595 = vmatprep.subr.mxu0 0.0
    %596 = vmatpush1.msra.mxu0 0.0
    %597 = vmatprep.subr.mxu0 0.0
    %598 = vmatpush1.msra.mxu0 0.0
    %599 = vmatprep.subr.mxu0 0.0
    %600 = vmatpush1.msra.mxu0 0.0
    %601 = vmatprep.subr.mxu0 0.0
    %602 = vmatpush1.msra.mxu0 0.0
    %603 = vmatprep.subr.mxu0 0.0
    %604 = vmatpush1.msra.mxu0 0.0
    %605 = vmatprep.subr.mxu0 0.0
    %606 = vmatpush1.msra.mxu0 0.0
    %607 = vmatprep.subr.mxu0 0.0
    %608 = vmatpush1.msra.mxu0 0.0
    %609 = vmatprep.subr.mxu0 0.0
    %610 = vmatpush1.msra.mxu0 0.0
    %611 = vmatprep.subr.mxu0 0.0
    %612 = vmatpush1.msra.mxu0 0.0
    %613 = vmatprep.subr.mxu0 0.0
    %614 = vmatpush1.msra.mxu0 %v194
    %615 = vmatprep.subr.mxu0 0.0
    %616 = vmatpush1.msra.mxu0 %v182
    %617 = vmatprep.subr.mxu0 0.0
    %618 = vmatpush1.msra.mxu0 %v181
    %619 = vmatprep.subr.mxu0 0.0
    %620 = vmatpush2.msra.mxu0 0.0
    %621 = vmatprep.subr.mxu0 0.0
    %622 = vmatpush2.msra.mxu0 0.0
    %623 = vmatprep.subr.mxu0 0.0
    %624 = vmatpush2.msra.mxu0 0.0
    %625 = vmatprep.subr.mxu0 0.0
    %626 = vmatpush2.msra.mxu0 0.0
    %627 = vmatprep.subr.mxu0 0.0
    %628 = vmatpush2.msra.mxu0 0.0
    %629 = vmatprep.subr.mxu0 0.0
    %630 = vmatpush2.msra.mxu0 0.0
    %631 = vmatprep.subr.mxu0 0.0
    %632 = vmatpush2.msra.mxu0 0.0
    %633 = vmatprep.subr.mxu0 0.0
    %634 = vmatpush2.msra.mxu0 0.0
    %635 = vmatprep.subr.mxu0 0.0
    %636 = vmatpush2.msra.mxu0 0.0
    %637 = vmatprep.subr.mxu0 0.0
    %638 = vmatpush2.msra.mxu0 0.0
    %639 = vmatprep.subr.mxu0 0.0
    %640 = vmatpush2.msra.mxu0 0.0
    %641 = vmatprep.subr.mxu0 0.0
    %642 = vmatpush2.msra.mxu0 0.0
    %643 = vmatprep.subr.mxu0 0.0
    %644 = vmatpush2.msra.mxu0 0.0
    %645 = vmatprep.subr.mxu0 0.0
    %646 = vmatpush2.msra.mxu0 0.0
    %647 = vmatprep.subr.mxu0 0.0
    %648 = vmatpush2.msra.mxu0 0.0
    %649 = vmatprep.subr.mxu0 0.0
    %650 = vmatpush2.msra.mxu0 0.0
    %651 = vmatprep.mubr.f32.mxu0 0.0
    %652 = vmatmul.mubr.f32.gmra.mxu0 %v585
    %v653 = vpop.f32.mrf.mxu0
    %v654 = vadd.f32 0.0, %v653
    %v655 = vpop.f32.mrf.mxu0
    %656 = vdwg.mxu0
    %v658 = vrot.slane %v654, 3
    %v660 = vadd.f32 %v178, %v658
    %v661 = vtanh.pop %v660
    %v663 = vrot.slane %v661, 5
    %v664 = vsel %vm188, %v663, 0
    %666 = vmatprep.subr.mxu0 0.0
    %667 = vmatpush1.msra.mxu0 0.0
    %668 = vmatprep.subr.mxu0 0.0
    %669 = vmatpush1.msra.mxu0 0.0
    %670 = vmatprep.subr.mxu0 0.0
    %671 = vmatpush1.msra.mxu0 0.0
    %672 = vmatprep.subr.mxu0 0.0
    %673 = vmatpush1.msra.mxu0 0.0
    %674 = vmatprep.subr.mxu0 0.0
    %675 = vmatpush1.msra.mxu0 0.0
    %676 = vmatprep.subr.mxu0 0.0
    %677 = vmatpush1.msra.mxu0 0.0
    %678 = vmatprep.subr.mxu0 0.0
    %679 = vmatpush1.msra.mxu0 0.0
    %680 = vmatprep.subr.mxu0 0.0
    %681 = vmatpush1.msra.mxu0 0.0
    %682 = vmatprep.subr.mxu0 0.0
    %683 = vmatpush1.msra.mxu0 0.0
    %684 = vmatprep.subr.mxu0 0.0
    %685 = vmatpush1.msra.mxu0 0.0
    %686 = vmatprep.subr.mxu0 0.0
    %687 = vmatpush1.msra.mxu0 0.0
    %688 = vmatprep.subr.mxu0 0.0
    %689 = vmatpush1.msra.mxu0 0.0
    %690 = vmatprep.subr.mxu0 0.0
    %691 = vmatpush1.msra.mxu0 0.0
    %692 = vmatprep.subr.mxu0 0.0
    %693 = vmatpush1.msra.mxu0 %v194
    %694 = vmatprep.subr.mxu0 0.0
    %695 = vmatpush1.msra.mxu0 %v182
    %696 = vmatprep.subr.mxu0 0.0
    %697 = vmatpush1.msra.mxu0 %v181
    %698 = vmatprep.subr.mxu0 0.0
    %699 = vmatpush2.msra.mxu0 0.0
    %700 = vmatprep.subr.mxu0 0.0
    %701 = vmatpush2.msra.mxu0 0.0
    %702 = vmatprep.subr.mxu0 0.0
    %703 = vmatpush2.msra.mxu0 0.0
    %704 = vmatprep.subr.mxu0 0.0
    %705 = vmatpush2.msra.mxu0 0.0
    %706 = vmatprep.subr.mxu0 0.0
    %707 = vmatpush2.msra.mxu0 0.0
    %708 = vmatprep.subr.mxu0 0.0
    %709 = vmatpush2.msra.mxu0 0.0
    %710 = vmatprep.subr.mxu0 0.0
    %711 = vmatpush2.msra.mxu0 0.0
    %712 = vmatprep.subr.mxu0 0.0
    %713 = vmatpush2.msra.mxu0 0.0
    %714 = vmatprep.subr.mxu0 0.0
    %715 = vmatpush2.msra.mxu0 0.0
    %716 = vmatprep.subr.mxu0 0.0
    %717 = vmatpush2.msra.mxu0 0.0
    %718 = vmatprep.subr.mxu0 0.0
    %719 = vmatpush2.msra.mxu0 0.0
    %720 = vmatprep.subr.mxu0 0.0
    %721 = vmatpush2.msra.mxu0 0.0
    %722 = vmatprep.subr.mxu0 0.0
    %723 = vmatpush2.msra.mxu0 0.0
    %724 = vmatprep.subr.mxu0 0.0
    %725 = vmatpush2.msra.mxu0 0.0
    %726 = vmatprep.subr.mxu0 0.0
    %727 = vmatpush2.msra.mxu0 0.0
    %728 = vmatprep.subr.mxu0 0.0
    %729 = vmatpush2.msra.mxu0 0.0
    %730 = vmatprep.mubr.f32.mxu0 0.0
    %731 = vmatmul.mubr.f32.gmra.mxu0 %v664
    %v732 = vpop.f32.mrf.mxu0
    %v733 = vadd.f32 0.0, %v732
    %v734 = vpop.f32.mrf.mxu0
    %735 = vdwg.mxu0
    %v737 = vrot.slane %v733, 2
    %v739 = vadd.f32 %v178, %v737
    %v740 = vtanh.pop %v739
    %v742 = vrot.slane %v740, 6
    %v743 = vsel %vm188, %v742, 0
    %745 = vmatprep.subr.mxu0 0.0
    %746 = vmatpush1.msra.mxu0 0.0
    %747 = vmatprep.subr.mxu0 0.0
    %748 = vmatpush1.msra.mxu0 0.0
    %749 = vmatprep.subr.mxu0 0.0
    %750 = vmatpush1.msra.mxu0 0.0
    %751 = vmatprep.subr.mxu0 0.0
    %752 = vmatpush1.msra.mxu0 0.0
    %753 = vmatprep.subr.mxu0 0.0
    %754 = vmatpush1.msra.mxu0 0.0
    %755 = vmatprep.subr.mxu0 0.0
    %756 = vmatpush1.msra.mxu0 0.0
    %757 = vmatprep.subr.mxu0 0.0
    %758 = vmatpush1.msra.mxu0 0.0
    %759 = vmatprep.subr.mxu0 0.0
    %760 = vmatpush1.msra.mxu0 0.0
    %761 = vmatprep.subr.mxu0 0.0
    %762 = vmatpush1.msra.mxu0 0.0
    %763 = vmatprep.subr.mxu0 0.0
    %764 = vmatpush1.msra.mxu0 0.0
    %765 = vmatprep.subr.mxu0 0.0
    %766 = vmatpush1.msra.mxu0 0.0
    %767 = vmatprep.subr.mxu0 0.0
    %768 = vmatpush1.msra.mxu0 0.0
    %769 = vmatprep.subr.mxu0 0.0
    %770 = vmatpush1.msra.mxu0 0.0
    %771 = vmatprep.subr.mxu0 0.0
    %772 = vmatpush1.msra.mxu0 %v194
    %773 = vmatprep.subr.mxu0 0.0
    %774 = vmatpush1.msra.mxu0 %v182
    %775 = vmatprep.subr.mxu0 0.0
    %776 = vmatpush1.msra.mxu0 %v181
    %777 = vmatprep.subr.mxu0 0.0
    %778 = vmatpush2.msra.mxu0 0.0
    %779 = vmatprep.subr.mxu0 0.0
    %780 = vmatpush2.msra.mxu0 0.0
    %781 = vmatprep.subr.mxu0 0.0
    %782 = vmatpush2.msra.mxu0 0.0
    %783 = vmatprep.subr.mxu0 0.0
    %784 = vmatpush2.msra.mxu0 0.0
    %785 = vmatprep.subr.mxu0 0.0
    %786 = vmatpush2.msra.mxu0 0.0
    %787 = vmatprep.subr.mxu0 0.0
    %788 = vmatpush2.msra.mxu0 0.0
    %789 = vmatprep.subr.mxu0 0.0
    %790 = vmatpush2.msra.mxu0 0.0
    %791 = vmatprep.subr.mxu0 0.0
    %792 = vmatpush2.msra.mxu0 0.0
    %793 = vmatprep.subr.mxu0 0.0
    %794 = vmatpush2.msra.mxu0 0.0
    %795 = vmatprep.subr.mxu0 0.0
    %796 = vmatpush2.msra.mxu0 0.0
    %797 = vmatprep.subr.mxu0 0.0
    %798 = vmatpush2.msra.mxu0 0.0
    %799 = vmatprep.subr.mxu0 0.0
    %800 = vmatpush2.msra.mxu0 0.0
    %801 = vmatprep.subr.mxu0 0.0
    %802 = vmatpush2.msra.mxu0 0.0
    %803 = vmatprep.subr.mxu0 0.0
    %804 = vmatpush2.msra.mxu0 0.0
    %805 = vmatprep.subr.mxu0 0.0
    %806 = vmatpush2.msra.mxu0 0.0
    %807 = vmatprep.subr.mxu0 0.0
    %808 = vmatpush2.msra.mxu0 0.0
    %809 = vmatprep.mubr.f32.mxu0 0.0
    %810 = vmatmul.mubr.f32.gmra.mxu0 %v743
    %v811 = vpop.f32.mrf.mxu0
    %v812 = vadd.f32 0.0, %v811
    %v813 = vpop.f32.mrf.mxu0
    %814 = vdwg.mxu0
    %v816 = vrot.slane %v812, 1
    %v818 = vadd.f32 %v178, %v816
    %v819 = vtanh.pop %v818
    %vm820 = vcmask 1040384
    %v821 = vsel %vm820, %v267, %v345
    %v822 = vsel %vm107, %v821, %v424
    %vm823 = vcmask 1042432
    %v824 = vsel %vm823, %v822, %v503
    %v825 = vsel %vm192, %v824, %v582
    %vm826 = vcmask 1044480
    %v827 = vsel %vm826, %v825, %v661
    %vm828 = vcmask 1045504
    %v829 = vsel %vm828, %v827, %v740
    %vm830 = vcmask 1046528
    %v831 = vsel %vm830, %v829, %v819
    %v832 = vld [vmem:[%s6] sm:$0xff]
    %v833 = vld [vmem:[%s6 + $0x8] sm:$0xff]
    %v834 = vld [vmem:[%s6 + $0x10] sm:$0xf]
    %v835 = vld [vmem:[%s8] sm:$0x1]
    %v836 = vld [vmem:[%s9] sm:$0x1]
    %v837 = vadd.f32 %v835, %v836
    %v839 = vlaneseq
    %v840 = vshrl.u32 %v839, 7
    %v841 = vsub.s32 0, %v840
    %v842 = vrot.slane %v837, %v841
    %v845 = vsel %vm188, %v831, 0
    %v848 = vsel %vm192, %v834, 0
    %850 = vmatprep.subr.mxu0 0.0
    %851 = vmatpush1.msra.mxu0 0.0
    %852 = vmatprep.subr.mxu0 0.0
    %853 = vmatpush1.msra.mxu0 0.0
    %854 = vmatprep.subr.mxu0 0.0
    %855 = vmatpush1.msra.mxu0 0.0
    %856 = vmatprep.subr.mxu0 0.0
    %857 = vmatpush1.msra.mxu0 0.0
    %858 = vmatprep.subr.mxu0 0.0
    %859 = vmatpush1.msra.mxu0 0.0
    %860 = vmatprep.subr.mxu0 0.0
    %861 = vmatpush1.msra.mxu0 0.0
    %862 = vmatprep.subr.mxu0 0.0
    %863 = vmatpush1.msra.mxu0 0.0
    %864 = vmatprep.subr.mxu0 0.0
    %865 = vmatpush1.msra.mxu0 0.0
    %866 = vmatprep.subr.mxu0 0.0
    %867 = vmatpush1.msra.mxu0 0.0
    %868 = vmatprep.subr.mxu0 0.0
    %869 = vmatpush1.msra.mxu0 0.0
    %870 = vmatprep.subr.mxu0 0.0
    %871 = vmatpush1.msra.mxu0 0.0
    %872 = vmatprep.subr.mxu0 0.0
    %873 = vmatpush1.msra.mxu0 0.0
    %874 = vmatprep.subr.mxu0 0.0
    %875 = vmatpush1.msra.mxu0 0.0
    %876 = vmatprep.subr.mxu0 0.0
    %877 = vmatpush1.msra.mxu0 %v848
    %878 = vmatprep.subr.mxu0 0.0
    %879 = vmatpush1.msra.mxu0 %v833
    %880 = vmatprep.subr.mxu0 0.0
    %881 = vmatpush1.msra.mxu0 %v832
    %882 = vmatprep.subr.mxu0 0.0
    %883 = vmatpush2.msra.mxu0 0.0
    %884 = vmatprep.subr.mxu0 0.0
    %885 = vmatpush2.msra.mxu0 0.0
    %886 = vmatprep.subr.mxu0 0.0
    %887 = vmatpush2.msra.mxu0 0.0
    %888 = vmatprep.subr.mxu0 0.0
    %889 = vmatpush2.msra.mxu0 0.0
    %890 = vmatprep.subr.mxu0 0.0
    %891 = vmatpush2.msra.mxu0 0.0
    %892 = vmatprep.subr.mxu0 0.0
    %893 = vmatpush2.msra.mxu0 0.0
    %894 = vmatprep.subr.mxu0 0.0
    %895 = vmatpush2.msra.mxu0 0.0
    %896 = vmatprep.subr.mxu0 0.0
    %897 = vmatpush2.msra.mxu0 0.0
    %898 = vmatprep.subr.mxu0 0.0
    %899 = vmatpush2.msra.mxu0 0.0
    %900 = vmatprep.subr.mxu0 0.0
    %901 = vmatpush2.msra.mxu0 0.0
    %902 = vmatprep.subr.mxu0 0.0
    %903 = vmatpush2.msra.mxu0 0.0
    %904 = vmatprep.subr.mxu0 0.0
    %905 = vmatpush2.msra.mxu0 0.0
    %906 = vmatprep.subr.mxu0 0.0
    %907 = vmatpush2.msra.mxu0 0.0
    %908 = vmatprep.subr.mxu0 0.0
    %909 = vmatpush2.msra.mxu0 0.0
    %910 = vmatprep.subr.mxu0 0.0
    %911 = vmatpush2.msra.mxu0 0.0
    %912 = vmatprep.subr.mxu0 0.0
    %913 = vmatpush2.msra.mxu0 0.0
    %914 = vmatprep.mubr.f32.mxu0 0.0
    %915 = vmatmul.mubr.f32.gmra.mxu0 %v845
    %v916 = vpop.f32.mrf.mxu0
    %v917 = vadd.f32 %v842, %v916
    %v918 = vpop.f32.mrf.mxu0
    %919 = vdwg.mxu0
    %v920 = vld [vmem:[%s12 + $0x1] sm:$0x1]
    %v922 = vsel %vm188, %v920, 0
    %v925 = vsel %vm192, %v186, 0
    %927 = vmatprep.subr.mxu0 0.0
    %928 = vmatpush1.msra.mxu0 0.0
    %929 = vmatprep.subr.mxu0 0.0
    %930 = vmatpush1.msra.mxu0 0.0
    %931 = vmatprep.subr.mxu0 0.0
    %932 = vmatpush1.msra.mxu0 0.0
    %933 = vmatprep.subr.mxu0 0.0
    %934 = vmatpush1.msra.mxu0 0.0
    %935 = vmatprep.subr.mxu0 0.0
    %936 = vmatpush1.msra.mxu0 0.0
    %937 = vmatprep.subr.mxu0 0.0
    %938 = vmatpush1.msra.mxu0 0.0
    %939 = vmatprep.subr.mxu0 0.0
    %940 = vmatpush1.msra.mxu0 0.0
    %941 = vmatprep.subr.mxu0 0.0
    %942 = vmatpush1.msra.mxu0 0.0
    %943 = vmatprep.subr.mxu0 0.0
    %944 = vmatpush1.msra.mxu0 0.0
    %945 = vmatprep.subr.mxu0 0.0
    %946 = vmatpush1.msra.mxu0 0.0
    %947 = vmatprep.subr.mxu0 0.0
    %948 = vmatpush1.msra.mxu0 0.0
    %949 = vmatprep.subr.mxu0 0.0
    %950 = vmatpush1.msra.mxu0 0.0
    %951 = vmatprep.subr.mxu0 0.0
    %952 = vmatpush1.msra.mxu0 0.0
    %953 = vmatprep.subr.mxu0 0.0
    %954 = vmatpush1.msra.mxu0 %v925
    %955 = vmatprep.subr.mxu0 0.0
    %956 = vmatpush1.msra.mxu0 %v185
    %957 = vmatprep.subr.mxu0 0.0
    %958 = vmatpush1.msra.mxu0 %v184
    %959 = vmatprep.subr.mxu0 0.0
    %960 = vmatpush2.msra.mxu0 0.0
    %961 = vmatprep.subr.mxu0 0.0
    %962 = vmatpush2.msra.mxu0 0.0
    %963 = vmatprep.subr.mxu0 0.0
    %964 = vmatpush2.msra.mxu0 0.0
    %965 = vmatprep.subr.mxu0 0.0
    %966 = vmatpush2.msra.mxu0 0.0
    %967 = vmatprep.subr.mxu0 0.0
    %968 = vmatpush2.msra.mxu0 0.0
    %969 = vmatprep.subr.mxu0 0.0
    %970 = vmatpush2.msra.mxu0 0.0
    %971 = vmatprep.subr.mxu0 0.0
    %972 = vmatpush2.msra.mxu0 0.0
    %973 = vmatprep.subr.mxu0 0.0
    %974 = vmatpush2.msra.mxu0 0.0
    %975 = vmatprep.subr.mxu0 0.0
    %976 = vmatpush2.msra.mxu0 0.0
    %977 = vmatprep.subr.mxu0 0.0
    %978 = vmatpush2.msra.mxu0 0.0
    %979 = vmatprep.subr.mxu0 0.0
    %980 = vmatpush2.msra.mxu0 0.0
    %981 = vmatprep.subr.mxu0 0.0
    %982 = vmatpush2.msra.mxu0 0.0
    %983 = vmatprep.subr.mxu0 0.0
    %984 = vmatpush2.msra.mxu0 0.0
    %985 = vmatprep.subr.mxu0 0.0
    %986 = vmatpush2.msra.mxu0 0.0
    %987 = vmatprep.subr.mxu0 0.0
    %988 = vmatpush2.msra.mxu0 0.0
    %989 = vmatprep.subr.mxu0 0.0
    %990 = vmatpush2.msra.mxu0 0.0
    %991 = vmatprep.mubr.f32.mxu0 0.0
    %992 = vmatmul.mubr.f32.gmra.mxu0 %v922
    %v993 = vpop.f32.mrf.mxu0
    %v994 = vadd.f32 0.0, %v993
    %v995 = vpop.f32.mrf.mxu0
    %996 = vdwg.mxu0
    %v997 = vadd.f32 %v917, %v994
    %v998 = vtanh.pop %v997
    %v1000 = vsel %vm188, %v998, 0
    %1002 = vmatprep.subr.mxu0 0.0
    %1003 = vmatpush1.msra.mxu0 0.0
    %1004 = vmatprep.subr.mxu0 0.0
    %1005 = vmatpush1.msra.mxu0 0.0
    %1006 = vmatprep.subr.mxu0 0.0
    %1007 = vmatpush1.msra.mxu0 0.0
    %1008 = vmatprep.subr.mxu0 0.0
    %1009 = vmatpush1.msra.mxu0 0.0
    %1010 = vmatprep.subr.mxu0 0.0
    %1011 = vmatpush1.msra.mxu0 0.0
    %1012 = vmatprep.subr.mxu0 0.0
    %1013 = vmatpush1.msra.mxu0 0.0
    %1014 = vmatprep.subr.mxu0 0.0
    %1015 = vmatpush1.msra.mxu0 0.0
    %1016 = vmatprep.subr.mxu0 0.0
    %1017 = vmatpush1.msra.mxu0 0.0
    %1018 = vmatprep.subr.mxu0 0.0
    %1019 = vmatpush1.msra.mxu0 0.0
    %1020 = vmatprep.subr.mxu0 0.0
    %1021 = vmatpush1.msra.mxu0 0.0
    %1022 = vmatprep.subr.mxu0 0.0
    %1023 = vmatpush1.msra.mxu0 0.0
    %1024 = vmatprep.subr.mxu0 0.0
    %1025 = vmatpush1.msra.mxu0 0.0
    %1026 = vmatprep.subr.mxu0 0.0
    %1027 = vmatpush1.msra.mxu0 0.0
    %1028 = vmatprep.subr.mxu0 0.0
    %1029 = vmatpush1.msra.mxu0 %v925
    %1030 = vmatprep.subr.mxu0 0.0
    %1031 = vmatpush1.msra.mxu0 %v185
    %1032 = vmatprep.subr.mxu0 0.0
    %1033 = vmatpush1.msra.mxu0 %v184
    %1034 = vmatprep.subr.mxu0 0.0
    %1035 = vmatpush2.msra.mxu0 0.0
    %1036 = vmatprep.subr.mxu0 0.0
    %1037 = vmatpush2.msra.mxu0 0.0
    %1038 = vmatprep.subr.mxu0 0.0
    %1039 = vmatpush2.msra.mxu0 0.0
    %1040 = vmatprep.subr.mxu0 0.0
    %1041 = vmatpush2.msra.mxu0 0.0
    %1042 = vmatprep.subr.mxu0 0.0
    %1043 = vmatpush2.msra.mxu0 0.0
    %1044 = vmatprep.subr.mxu0 0.0
    %1045 = vmatpush2.msra.mxu0 0.0
    %1046 = vmatprep.subr.mxu0 0.0
    %1047 = vmatpush2.msra.mxu0 0.0
    %1048 = vmatprep.subr.mxu0 0.0
    %1049 = vmatpush2.msra.mxu0 0.0
    %1050 = vmatprep.subr.mxu0 0.0
    %1051 = vmatpush2.msra.mxu0 0.0
    %1052 = vmatprep.subr.mxu0 0.0
    %1053 = vmatpush2.msra.mxu0 0.0
    %1054 = vmatprep.subr.mxu0 0.0
    %1055 = vmatpush2.msra.mxu0 0.0
    %1056 = vmatprep.subr.mxu0 0.0
    %1057 = vmatpush2.msra.mxu0 0.0
    %1058 = vmatprep.subr.mxu0 0.0
    %1059 = vmatpush2.msra.mxu0 0.0
    %1060 = vmatprep.subr.mxu0 0.0
    %1061 = vmatpush2.msra.mxu0 0.0
    %1062 = vmatprep.subr.mxu0 0.0
    %1063 = vmatpush2.msra.mxu0 0.0
    %1064 = vmatprep.subr.mxu0 0.0
    %1065 = vmatpush2.msra.mxu0 0.0
    %1066 = vmatprep.mubr.f32.mxu0 0.0
    %1067 = vmatmul.mubr.f32.gmra.mxu0 %v1000
    %v1068 = vpop.f32.mrf.mxu0
    %v1069 = vadd.f32 0.0, %v1068
    %v1070 = vpop.f32.mrf.mxu0
    %1071 = vdwg.mxu0
    %v1073 = vrot.slane %v1069, 7
    %v1075 = vadd.f32 %v917, %v1073
    %v1076 = vtanh.pop %v1075
    %v1078 = vrot.slane %v1076, 1
    %v1079 = vsel %vm188, %v1078, 0
    %1081 = vmatprep.subr.mxu0 0.0
    %1082 = vmatpush1.msra.mxu0 0.0
    %1083 = vmatprep.subr.mxu0 0.0
    %1084 = vmatpush1.msra.mxu0 0.0
    %1085 = vmatprep.subr.mxu0 0.0
    %1086 = vmatpush1.msra.mxu0 0.0
    %1087 = vmatprep.subr.mxu0 0.0
    %1088 = vmatpush1.msra.mxu0 0.0
    %1089 = vmatprep.subr.mxu0 0.0
    %1090 = vmatpush1.msra.mxu0 0.0
    %1091 = vmatprep.subr.mxu0 0.0
    %1092 = vmatpush1.msra.mxu0 0.0
    %1093 = vmatprep.subr.mxu0 0.0
    %1094 = vmatpush1.msra.mxu0 0.0
    %1095 = vmatprep.subr.mxu0 0.0
    %1096 = vmatpush1.msra.mxu0 0.0
    %1097 = vmatprep.subr.mxu0 0.0
    %1098 = vmatpush1.msra.mxu0 0.0
    %1099 = vmatprep.subr.mxu0 0.0
    %1100 = vmatpush1.msra.mxu0 0.0
    %1101 = vmatprep.subr.mxu0 0.0
    %1102 = vmatpush1.msra.mxu0 0.0
    %1103 = vmatprep.subr.mxu0 0.0
    %1104 = vmatpush1.msra.mxu0 0.0
    %1105 = vmatprep.subr.mxu0 0.0
    %1106 = vmatpush1.msra.mxu0 0.0
    %1107 = vmatprep.subr.mxu0 0.0
    %1108 = vmatpush1.msra.mxu0 %v925
    %1109 = vmatprep.subr.mxu0 0.0
    %1110 = vmatpush1.msra.mxu0 %v185
    %1111 = vmatprep.subr.mxu0 0.0
    %1112 = vmatpush1.msra.mxu0 %v184
    %1113 = vmatprep.subr.mxu0 0.0
    %1114 = vmatpush2.msra.mxu0 0.0
    %1115 = vmatprep.subr.mxu0 0.0
    %1116 = vmatpush2.msra.mxu0 0.0
    %1117 = vmatprep.subr.mxu0 0.0
    %1118 = vmatpush2.msra.mxu0 0.0
    %1119 = vmatprep.subr.mxu0 0.0
    %1120 = vmatpush2.msra.mxu0 0.0
    %1121 = vmatprep.subr.mxu0 0.0
    %1122 = vmatpush2.msra.mxu0 0.0
    %1123 = vmatprep.subr.mxu0 0.0
    %1124 = vmatpush2.msra.mxu0 0.0
    %1125 = vmatprep.subr.mxu0 0.0
    %1126 = vmatpush2.msra.mxu0 0.0
    %1127 = vmatprep.subr.mxu0 0.0
    %1128 = vmatpush2.msra.mxu0 0.0
    %1129 = vmatprep.subr.mxu0 0.0
    %1130 = vmatpush2.msra.mxu0 0.0
    %1131 = vmatprep.subr.mxu0 0.0
    %1132 = vmatpush2.msra.mxu0 0.0
    %1133 = vmatprep.subr.mxu0 0.0
    %1134 = vmatpush2.msra.mxu0 0.0
    %1135 = vmatprep.subr.mxu0 0.0
    %1136 = vmatpush2.msra.mxu0 0.0
    %1137 = vmatprep.subr.mxu0 0.0
    %1138 = vmatpush2.msra.mxu0 0.0
    %1139 = vmatprep.subr.mxu0 0.0
    %1140 = vmatpush2.msra.mxu0 0.0
    %1141 = vmatprep.subr.mxu0 0.0
    %1142 = vmatpush2.msra.mxu0 0.0
    %1143 = vmatprep.subr.mxu0 0.0
    %1144 = vmatpush2.msra.mxu0 0.0
    %1145 = vmatprep.mubr.f32.mxu0 0.0
    %1146 = vmatmul.mubr.f32.gmra.mxu0 %v1079
    %v1147 = vpop.f32.mrf.mxu0
    %v1148 = vadd.f32 0.0, %v1147
    %v1149 = vpop.f32.mrf.mxu0
    %1150 = vdwg.mxu0
    %v1152 = vrot.slane %v1148, 6
    %v1154 = vadd.f32 %v917, %v1152
    %v1155 = vtanh.pop %v1154
    %v1157 = vrot.slane %v1155, 2
    %v1158 = vsel %vm188, %v1157, 0
    %1160 = vmatprep.subr.mxu0 0.0
    %1161 = vmatpush1.msra.mxu0 0.0
    %1162 = vmatprep.subr.mxu0 0.0
    %1163 = vmatpush1.msra.mxu0 0.0
    %1164 = vmatprep.subr.mxu0 0.0
    %1165 = vmatpush1.msra.mxu0 0.0
    %1166 = vmatprep.subr.mxu0 0.0
    %1167 = vmatpush1.msra.mxu0 0.0
    %1168 = vmatprep.subr.mxu0 0.0
    %1169 = vmatpush1.msra.mxu0 0.0
    %1170 = vmatprep.subr.mxu0 0.0
    %1171 = vmatpush1.msra.mxu0 0.0
    %1172 = vmatprep.subr.mxu0 0.0
    %1173 = vmatpush1.msra.mxu0 0.0
    %1174 = vmatprep.subr.mxu0 0.0
    %1175 = vmatpush1.msra.mxu0 0.0
    %1176 = vmatprep.subr.mxu0 0.0
    %1177 = vmatpush1.msra.mxu0 0.0
    %1178 = vmatprep.subr.mxu0 0.0
    %1179 = vmatpush1.msra.mxu0 0.0
    %1180 = vmatprep.subr.mxu0 0.0
    %1181 = vmatpush1.msra.mxu0 0.0
    %1182 = vmatprep.subr.mxu0 0.0
    %1183 = vmatpush1.msra.mxu0 0.0
    %1184 = vmatprep.subr.mxu0 0.0
    %1185 = vmatpush1.msra.mxu0 0.0
    %1186 = vmatprep.subr.mxu0 0.0
    %1187 = vmatpush1.msra.mxu0 %v925
    %1188 = vmatprep.subr.mxu0 0.0
    %1189 = vmatpush1.msra.mxu0 %v185
    %1190 = vmatprep.subr.mxu0 0.0
    %1191 = vmatpush1.msra.mxu0 %v184
    %1192 = vmatprep.subr.mxu0 0.0
    %1193 = vmatpush2.msra.mxu0 0.0
    %1194 = vmatprep.subr.mxu0 0.0
    %1195 = vmatpush2.msra.mxu0 0.0
    %1196 = vmatprep.subr.mxu0 0.0
    %1197 = vmatpush2.msra.mxu0 0.0
    %1198 = vmatprep.subr.mxu0 0.0
    %1199 = vmatpush2.msra.mxu0 0.0
    %1200 = vmatprep.subr.mxu0 0.0
    %1201 = vmatpush2.msra.mxu0 0.0
    %1202 = vmatprep.subr.mxu0 0.0
    %1203 = vmatpush2.msra.mxu0 0.0
    %1204 = vmatprep.subr.mxu0 0.0
    %1205 = vmatpush2.msra.mxu0 0.0
    %1206 = vmatprep.subr.mxu0 0.0
    %1207 = vmatpush2.msra.mxu0 0.0
    %1208 = vmatprep.subr.mxu0 0.0
    %1209 = vmatpush2.msra.mxu0 0.0
    %1210 = vmatprep.subr.mxu0 0.0
    %1211 = vmatpush2.msra.mxu0 0.0
    %1212 = vmatprep.subr.mxu0 0.0
    %1213 = vmatpush2.msra.mxu0 0.0
    %1214 = vmatprep.subr.mxu0 0.0
    %1215 = vmatpush2.msra.mxu0 0.0
    %1216 = vmatprep.subr.mxu0 0.0
    %1217 = vmatpush2.msra.mxu0 0.0
    %1218 = vmatprep.subr.mxu0 0.0
    %1219 = vmatpush2.msra.mxu0 0.0
    %1220 = vmatprep.subr.mxu0 0.0
    %1221 = vmatpush2.msra.mxu0 0.0
    %1222 = vmatprep.subr.mxu0 0.0
    %1223 = vmatpush2.msra.mxu0 0.0
    %1224 = vmatprep.mubr.f32.mxu0 0.0
    %1225 = vmatmul.mubr.f32.gmra.mxu0 %v1158
    %v1226 = vpop.f32.mrf.mxu0
    %v1227 = vadd.f32 0.0, %v1226
    %v1228 = vpop.f32.mrf.mxu0
    %1229 = vdwg.mxu0
    %v1231 = vrot.slane %v1227, 5
    %v1233 = vadd.f32 %v917, %v1231
    %v1234 = vtanh.pop %v1233
    %v1236 = vrot.slane %v1234, 3
    %v1237 = vsel %vm188, %v1236, 0
    %1239 = vmatprep.subr.mxu0 0.0
    %1240 = vmatpush1.msra.mxu0 0.0
    %1241 = vmatprep.subr.mxu0 0.0
    %1242 = vmatpush1.msra.mxu0 0.0
    %1243 = vmatprep.subr.mxu0 0.0
    %1244 = vmatpush1.msra.mxu0 0.0
    %1245 = vmatprep.subr.mxu0 0.0
    %1246 = vmatpush1.msra.mxu0 0.0
    %1247 = vmatprep.subr.mxu0 0.0
    %1248 = vmatpush1.msra.mxu0 0.0
    %1249 = vmatprep.subr.mxu0 0.0
    %1250 = vmatpush1.msra.mxu0 0.0
    %1251 = vmatprep.subr.mxu0 0.0
    %1252 = vmatpush1.msra.mxu0 0.0
    %1253 = vmatprep.subr.mxu0 0.0
    %1254 = vmatpush1.msra.mxu0 0.0
    %1255 = vmatprep.subr.mxu0 0.0
    %1256 = vmatpush1.msra.mxu0 0.0
    %1257 = vmatprep.subr.mxu0 0.0
    %1258 = vmatpush1.msra.mxu0 0.0
    %1259 = vmatprep.subr.mxu0 0.0
    %1260 = vmatpush1.msra.mxu0 0.0
    %1261 = vmatprep.subr.mxu0 0.0
    %1262 = vmatpush1.msra.mxu0 0.0
    %1263 = vmatprep.subr.mxu0 0.0
    %1264 = vmatpush1.msra.mxu0 0.0
    %1265 = vmatprep.subr.mxu0 0.0
    %1266 = vmatpush1.msra.mxu0 %v925
    %1267 = vmatprep.subr.mxu0 0.0
    %1268 = vmatpush1.msra.mxu0 %v185
    %1269 = vmatprep.subr.mxu0 0.0
    %1270 = vmatpush1.msra.mxu0 %v184
    %1271 = vmatprep.subr.mxu0 0.0
    %1272 = vmatpush2.msra.mxu0 0.0
    %1273 = vmatprep.subr.mxu0 0.0
    %1274 = vmatpush2.msra.mxu0 0.0
    %1275 = vmatprep.subr.mxu0 0.0
    %1276 = vmatpush2.msra.mxu0 0.0
    %1277 = vmatprep.subr.mxu0 0.0
    %1278 = vmatpush2.msra.mxu0 0.0
    %1279 = vmatprep.subr.mxu0 0.0
    %1280 = vmatpush2.msra.mxu0 0.0
    %1281 = vmatprep.subr.mxu0 0.0
    %1282 = vmatpush2.msra.mxu0 0.0
    %1283 = vmatprep.subr.mxu0 0.0
    %1284 = vmatpush2.msra.mxu0 0.0
    %1285 = vmatprep.subr.mxu0 0.0
    %1286 = vmatpush2.msra.mxu0 0.0
    %1287 = vmatprep.subr.mxu0 0.0
    %1288 = vmatpush2.msra.mxu0 0.0
    %1289 = vmatprep.subr.mxu0 0.0
    %1290 = vmatpush2.msra.mxu0 0.0
    %1291 = vmatprep.subr.mxu0 0.0
    %1292 = vmatpush2.msra.mxu0 0.0
    %1293 = vmatprep.subr.mxu0 0.0
    %1294 = vmatpush2.msra.mxu0 0.0
    %1295 = vmatprep.subr.mxu0 0.0
    %1296 = vmatpush2.msra.mxu0 0.0
    %1297 = vmatprep.subr.mxu0 0.0
    %1298 = vmatpush2.msra.mxu0 0.0
    %1299 = vmatprep.subr.mxu0 0.0
    %1300 = vmatpush2.msra.mxu0 0.0
    %1301 = vmatprep.subr.mxu0 0.0
    %1302 = vmatpush2.msra.mxu0 0.0
    %1303 = vmatprep.mubr.f32.mxu0 0.0
    %1304 = vmatmul.mubr.f32.gmra.mxu0 %v1237
    %v1305 = vpop.f32.mrf.mxu0
    %v1306 = vadd.f32 0.0, %v1305
    %v1307 = vpop.f32.mrf.mxu0
    %1308 = vdwg.mxu0
    %v1310 = vrot.slane %v1306, 4
    %v1312 = vadd.f32 %v917, %v1310
    %v1313 = vtanh.pop %v1312
    %v1315 = vrot.slane %v1313, 4
    %v1316 = vsel %vm188, %v1315, 0
    %1318 = vmatprep.subr.mxu0 0.0
    %1319 = vmatpush1.msra.mxu0 0.0
    %1320 = vmatprep.subr.mxu0 0.0
    %1321 = vmatpush1.msra.mxu0 0.0
    %1322 = vmatprep.subr.mxu0 0.0
    %1323 = vmatpush1.msra.mxu0 0.0
    %1324 = vmatprep.subr.mxu0 0.0
    %1325 = vmatpush1.msra.mxu0 0.0
    %1326 = vmatprep.subr.mxu0 0.0
    %1327 = vmatpush1.msra.mxu0 0.0
    %1328 = vmatprep.subr.mxu0 0.0
    %1329 = vmatpush1.msra.mxu0 0.0
    %1330 = vmatprep.subr.mxu0 0.0
    %1331 = vmatpush1.msra.mxu0 0.0
    %1332 = vmatprep.subr.mxu0 0.0
    %1333 = vmatpush1.msra.mxu0 0.0
    %1334 = vmatprep.subr.mxu0 0.0
    %1335 = vmatpush1.msra.mxu0 0.0
    %1336 = vmatprep.subr.mxu0 0.0
    %1337 = vmatpush1.msra.mxu0 0.0
    %1338 = vmatprep.subr.mxu0 0.0
    %1339 = vmatpush1.msra.mxu0 0.0
    %1340 = vmatprep.subr.mxu0 0.0
    %1341 = vmatpush1.msra.mxu0 0.0
    %1342 = vmatprep.subr.mxu0 0.0
    %1343 = vmatpush1.msra.mxu0 0.0
    %1344 = vmatprep.subr.mxu0 0.0
    %1345 = vmatpush1.msra.mxu0 %v925
    %1346 = vmatprep.subr.mxu0 0.0
    %1347 = vmatpush1.msra.mxu0 %v185
    %1348 = vmatprep.subr.mxu0 0.0
    %1349 = vmatpush1.msra.mxu0 %v184
    %1350 = vmatprep.subr.mxu0 0.0
    %1351 = vmatpush2.msra.mxu0 0.0
    %1352 = vmatprep.subr.mxu0 0.0
    %1353 = vmatpush2.msra.mxu0 0.0
    %1354 = vmatprep.subr.mxu0 0.0
    %1355 = vmatpush2.msra.mxu0 0.0
    %1356 = vmatprep.subr.mxu0 0.0
    %1357 = vmatpush2.msra.mxu0 0.0
    %1358 = vmatprep.subr.mxu0 0.0
    %1359 = vmatpush2.msra.mxu0 0.0
    %1360 = vmatprep.subr.mxu0 0.0
    %1361 = vmatpush2.msra.mxu0 0.0
    %1362 = vmatprep.subr.mxu0 0.0
    %1363 = vmatpush2.msra.mxu0 0.0
    %1364 = vmatprep.subr.mxu0 0.0
    %1365 = vmatpush2.msra.mxu0 0.0
    %1366 = vmatprep.subr.mxu0 0.0
    %1367 = vmatpush2.msra.mxu0 0.0
    %1368 = vmatprep.subr.mxu0 0.0
    %1369 = vmatpush2.msra.mxu0 0.0
    %1370 = vmatprep.subr.mxu0 0.0
    %1371 = vmatpush2.msra.mxu0 0.0
    %1372 = vmatprep.subr.mxu0 0.0
    %1373 = vmatpush2.msra.mxu0 0.0
    %1374 = vmatprep.subr.mxu0 0.0
    %1375 = vmatpush2.msra.mxu0 0.0
    %1376 = vmatprep.subr.mxu0 0.0
    %1377 = vmatpush2.msra.mxu0 0.0
    %1378 = vmatprep.subr.mxu0 0.0
    %1379 = vmatpush2.msra.mxu0 0.0
    %1380 = vmatprep.subr.mxu0 0.0
    %1381 = vmatpush2.msra.mxu0 0.0
    %1382 = vmatprep.mubr.f32.mxu0 0.0
    %1383 = vmatmul.mubr.f32.gmra.mxu0 %v1316
    %v1384 = vpop.f32.mrf.mxu0
    %v1385 = vadd.f32 0.0, %v1384
    %v1386 = vpop.f32.mrf.mxu0
    %1387 = vdwg.mxu0
    %v1389 = vrot.slane %v1385, 3
    %v1391 = vadd.f32 %v917, %v1389
    %v1392 = vtanh.pop %v1391
    %v1394 = vrot.slane %v1392, 5
    %v1395 = vsel %vm188, %v1394, 0
    %1397 = vmatprep.subr.mxu0 0.0
    %1398 = vmatpush1.msra.mxu0 0.0
    %1399 = vmatprep.subr.mxu0 0.0
    %1400 = vmatpush1.msra.mxu0 0.0
    %1401 = vmatprep.subr.mxu0 0.0
    %1402 = vmatpush1.msra.mxu0 0.0
    %1403 = vmatprep.subr.mxu0 0.0
    %1404 = vmatpush1.msra.mxu0 0.0
    %1405 = vmatprep.subr.mxu0 0.0
    %1406 = vmatpush1.msra.mxu0 0.0
    %1407 = vmatprep.subr.mxu0 0.0
    %1408 = vmatpush1.msra.mxu0 0.0
    %1409 = vmatprep.subr.mxu0 0.0
    %1410 = vmatpush1.msra.mxu0 0.0
    %1411 = vmatprep.subr.mxu0 0.0
    %1412 = vmatpush1.msra.mxu0 0.0
    %1413 = vmatprep.subr.mxu0 0.0
    %1414 = vmatpush1.msra.mxu0 0.0
    %1415 = vmatprep.subr.mxu0 0.0
    %1416 = vmatpush1.msra.mxu0 0.0
    %1417 = vmatprep.subr.mxu0 0.0
    %1418 = vmatpush1.msra.mxu0 0.0
    %1419 = vmatprep.subr.mxu0 0.0
    %1420 = vmatpush1.msra.mxu0 0.0
    %1421 = vmatprep.subr.mxu0 0.0
    %1422 = vmatpush1.msra.mxu0 0.0
    %1423 = vmatprep.subr.mxu0 0.0
    %1424 = vmatpush1.msra.mxu0 %v925
    %1425 = vmatprep.subr.mxu0 0.0
    %1426 = vmatpush1.msra.mxu0 %v185
    %1427 = vmatprep.subr.mxu0 0.0
    %1428 = vmatpush1.msra.mxu0 %v184
    %1429 = vmatprep.subr.mxu0 0.0
    %1430 = vmatpush2.msra.mxu0 0.0
    %1431 = vmatprep.subr.mxu0 0.0
    %1432 = vmatpush2.msra.mxu0 0.0
    %1433 = vmatprep.subr.mxu0 0.0
    %1434 = vmatpush2.msra.mxu0 0.0
    %1435 = vmatprep.subr.mxu0 0.0
    %1436 = vmatpush2.msra.mxu0 0.0
    %1437 = vmatprep.subr.mxu0 0.0
    %1438 = vmatpush2.msra.mxu0 0.0
    %1439 = vmatprep.subr.mxu0 0.0
    %1440 = vmatpush2.msra.mxu0 0.0
    %1441 = vmatprep.subr.mxu0 0.0
    %1442 = vmatpush2.msra.mxu0 0.0
    %1443 = vmatprep.subr.mxu0 0.0
    %1444 = vmatpush2.msra.mxu0 0.0
    %1445 = vmatprep.subr.mxu0 0.0
    %1446 = vmatpush2.msra.mxu0 0.0
    %1447 = vmatprep.subr.mxu0 0.0
    %1448 = vmatpush2.msra.mxu0 0.0
    %1449 = vmatprep.subr.mxu0 0.0
    %1450 = vmatpush2.msra.mxu0 0.0
    %1451 = vmatprep.subr.mxu0 0.0
    %1452 = vmatpush2.msra.mxu0 0.0
    %1453 = vmatprep.subr.mxu0 0.0
    %1454 = vmatpush2.msra.mxu0 0.0
    %1455 = vmatprep.subr.mxu0 0.0
    %1456 = vmatpush2.msra.mxu0 0.0
    %1457 = vmatprep.subr.mxu0 0.0
    %1458 = vmatpush2.msra.mxu0 0.0
    %1459 = vmatprep.subr.mxu0 0.0
    %1460 = vmatpush2.msra.mxu0 0.0
    %1461 = vmatprep.mubr.f32.mxu0 0.0
    %1462 = vmatmul.mubr.f32.gmra.mxu0 %v1395
    %v1463 = vpop.f32.mrf.mxu0
    %v1464 = vadd.f32 0.0, %v1463
    %v1465 = vpop.f32.mrf.mxu0
    %1466 = vdwg.mxu0
    %v1468 = vrot.slane %v1464, 2
    %v1470 = vadd.f32 %v917, %v1468
    %v1471 = vtanh.pop %v1470
    %v1473 = vrot.slane %v1471, 6
    %v1474 = vsel %vm188, %v1473, 0
    %1476 = vmatprep.subr.mxu0 0.0
    %1477 = vmatpush1.msra.mxu0 0.0
    %1478 = vmatprep.subr.mxu0 0.0
    %1479 = vmatpush1.msra.mxu0 0.0
    %1480 = vmatprep.subr.mxu0 0.0
    %1481 = vmatpush1.msra.mxu0 0.0
    %1482 = vmatprep.subr.mxu0 0.0
    %1483 = vmatpush1.msra.mxu0 0.0
    %1484 = vmatprep.subr.mxu0 0.0
    %1485 = vmatpush1.msra.mxu0 0.0
    %1486 = vmatprep.subr.mxu0 0.0
    %1487 = vmatpush1.msra.mxu0 0.0
    %1488 = vmatprep.subr.mxu0 0.0
    %1489 = vmatpush1.msra.mxu0 0.0
    %1490 = vmatprep.subr.mxu0 0.0
    %1491 = vmatpush1.msra.mxu0 0.0
    %1492 = vmatprep.subr.mxu0 0.0
    %1493 = vmatpush1.msra.mxu0 0.0
    %1494 = vmatprep.subr.mxu0 0.0
    %1495 = vmatpush1.msra.mxu0 0.0
    %1496 = vmatprep.subr.mxu0 0.0
    %1497 = vmatpush1.msra.mxu0 0.0
    %1498 = vmatprep.subr.mxu0 0.0
    %1499 = vmatpush1.msra.mxu0 0.0
    %1500 = vmatprep.subr.mxu0 0.0
    %1501 = vmatpush1.msra.mxu0 0.0
    %1502 = vmatprep.subr.mxu0 0.0
    %1503 = vmatpush1.msra.mxu0 %v925
    %1504 = vmatprep.subr.mxu0 0.0
    %1505 = vmatpush1.msra.mxu0 %v185
    %1506 = vmatprep.subr.mxu0 0.0
    %1507 = vmatpush1.msra.mxu0 %v184
    %1508 = vmatprep.subr.mxu0 0.0
    %1509 = vmatpush2.msra.mxu0 0.0
    %1510 = vmatprep.subr.mxu0 0.0
    %1511 = vmatpush2.msra.mxu0 0.0
    %1512 = vmatprep.subr.mxu0 0.0
    %1513 = vmatpush2.msra.mxu0 0.0
    %1514 = vmatprep.subr.mxu0 0.0
    %1515 = vmatpush2.msra.mxu0 0.0
    %1516 = vmatprep.subr.mxu0 0.0
    %1517 = vmatpush2.msra.mxu0 0.0
    %1518 = vmatprep.subr.mxu0 0.0
    %1519 = vmatpush2.msra.mxu0 0.0
    %1520 = vmatprep.subr.mxu0 0.0
    %1521 = vmatpush2.msra.mxu0 0.0
    %1522 = vmatprep.subr.mxu0 0.0
    %1523 = vmatpush2.msra.mxu0 0.0
    %1524 = vmatprep.subr.mxu0 0.0
    %1525 = vmatpush2.msra.mxu0 0.0
    %1526 = vmatprep.subr.mxu0 0.0
    %1527 = vmatpush2.msra.mxu0 0.0
    %1528 = vmatprep.subr.mxu0 0.0
    %1529 = vmatpush2.msra.mxu0 0.0
    %1530 = vmatprep.subr.mxu0 0.0
    %1531 = vmatpush2.msra.mxu0 0.0
    %1532 = vmatprep.subr.mxu0 0.0
    %1533 = vmatpush2.msra.mxu0 0.0
    %1534 = vmatprep.subr.mxu0 0.0
    %1535 = vmatpush2.msra.mxu0 0.0
    %1536 = vmatprep.subr.mxu0 0.0
    %1537 = vmatpush2.msra.mxu0 0.0
    %1538 = vmatprep.subr.mxu0 0.0
    %1539 = vmatpush2.msra.mxu0 0.0
    %1540 = vmatprep.mubr.f32.mxu0 0.0
    %1541 = vmatmul.mubr.f32.gmra.mxu0 %v1474
    %v1542 = vpop.f32.mrf.mxu0
    %v1543 = vadd.f32 0.0, %v1542
    %v1544 = vpop.f32.mrf.mxu0
    %1545 = vdwg.mxu0
    %v1547 = vrot.slane %v1543, 1
    %v1549 = vadd.f32 %v917, %v1547
    %v1550 = vtanh.pop %v1549
    %v1551 = vld [vmem:[%s10] sm:$0xff]
    %v1552 = vld [vmem:[%s10 + $0x8] sm:$0xff]
    %v1553 = vld [vmem:[%s10 + $0x10] sm:$0xf]
    %v1554 = vld [vmem:[%s11] sm:$0x1]
    %v1556 = vrot.slane %v1550, 7
    %v1557 = vsel %vm188, %v1556, 0
    %v1560 = vsel %vm192, %v1553, 0
    %1562 = vmatprep.subr.mxu0 0.0
    %1563 = vmatpush1.msra.mxu0 0.0
    %1564 = vmatprep.subr.mxu0 0.0
    %1565 = vmatpush1.msra.mxu0 0.0
    %1566 = vmatprep.subr.mxu0 0.0
    %1567 = vmatpush1.msra.mxu0 0.0
    %1568 = vmatprep.subr.mxu0 0.0
    %1569 = vmatpush1.msra.mxu0 0.0
    %1570 = vmatprep.subr.mxu0 0.0
    %1571 = vmatpush1.msra.mxu0 0.0
    %1572 = vmatprep.subr.mxu0 0.0
    %1573 = vmatpush1.msra.mxu0 0.0
    %1574 = vmatprep.subr.mxu0 0.0
    %1575 = vmatpush1.msra.mxu0 0.0
    %1576 = vmatprep.subr.mxu0 0.0
    %1577 = vmatpush1.msra.mxu0 0.0
    %1578 = vmatprep.subr.mxu0 0.0
    %1579 = vmatpush1.msra.mxu0 0.0
    %1580 = vmatprep.subr.mxu0 0.0
    %1581 = vmatpush1.msra.mxu0 0.0
    %1582 = vmatprep.subr.mxu0 0.0
    %1583 = vmatpush1.msra.mxu0 0.0
    %1584 = vmatprep.subr.mxu0 0.0
    %1585 = vmatpush1.msra.mxu0 0.0
    %1586 = vmatprep.subr.mxu0 0.0
    %1587 = vmatpush1.msra.mxu0 0.0
    %1588 = vmatprep.subr.mxu0 0.0
    %1589 = vmatpush1.msra.mxu0 %v1560
    %1590 = vmatprep.subr.mxu0 0.0
    %1591 = vmatpush1.msra.mxu0 %v1552
    %1592 = vmatprep.subr.mxu0 0.0
    %1593 = vmatpush1.msra.mxu0 %v1551
    %1594 = vmatprep.subr.mxu0 0.0
    %1595 = vmatpush2.msra.mxu0 0.0
    %1596 = vmatprep.subr.mxu0 0.0
    %1597 = vmatpush2.msra.mxu0 0.0
    %1598 = vmatprep.subr.mxu0 0.0
    %1599 = vmatpush2.msra.mxu0 0.0
    %1600 = vmatprep.subr.mxu0 0.0
    %1601 = vmatpush2.msra.mxu0 0.0
    %1602 = vmatprep.subr.mxu0 0.0
    %1603 = vmatpush2.msra.mxu0 0.0
    %1604 = vmatprep.subr.mxu0 0.0
    %1605 = vmatpush2.msra.mxu0 0.0
    %1606 = vmatprep.subr.mxu0 0.0
    %1607 = vmatpush2.msra.mxu0 0.0
    %1608 = vmatprep.subr.mxu0 0.0
    %1609 = vmatpush2.msra.mxu0 0.0
    %1610 = vmatprep.subr.mxu0 0.0
    %1611 = vmatpush2.msra.mxu0 0.0
    %1612 = vmatprep.subr.mxu0 0.0
    %1613 = vmatpush2.msra.mxu0 0.0
    %1614 = vmatprep.subr.mxu0 0.0
    %1615 = vmatpush2.msra.mxu0 0.0
    %1616 = vmatprep.subr.mxu0 0.0
    %1617 = vmatpush2.msra.mxu0 0.0
    %1618 = vmatprep.subr.mxu0 0.0
    %1619 = vmatpush2.msra.mxu0 0.0
    %1620 = vmatprep.subr.mxu0 0.0
    %1621 = vmatpush2.msra.mxu0 0.0
    %1622 = vmatprep.subr.mxu0 0.0
    %1623 = vmatpush2.msra.mxu0 0.0
    %1624 = vmatprep.subr.mxu0 0.0
    %1625 = vmatpush2.msra.mxu0 0.0
    %1626 = vmatprep.mubr.f32.mxu0 0.0
    %1627 = vmatmul.mubr.f32.gmra.mxu0 %v1557
    %v1628 = vpop.f32.mrf.mxu0
    %v1629 = vadd.f32 %v1554, %v1628
    %v1630 = vpop.f32.mrf.mxu0
    %1631 = vdwg.mxu0
    %vm1632 = vcmask 32768
    %v1633 = vsel %vm1632, %v1629, -inf
    %1634 = vmax.xlane.f32.xlu0 %v1633
    %v1635 = vpop.xlane.xlu0 %1634
    %v1636 = vsub.f32 %v1629, %v1635
    %v1637 = vmul.f32 %v1636, 1.442695
    %v1638 = vpow.pop %v1637
    %v1639 = vsel %vm1632, %v1638, 0.0
    %1640 = vadd.xlane.f32.xlu0 %v1639
    %v1641 = vpop.xlane.xlu0 %1640
    %v1642 = vlog2.pop %v1641
    %v1643 = vmul.f32 %v1642, 0.6931472
    %v1644 = vadd.f32 %v1635, %v1643
    %v1645 = vsub.f32 %v1629, %v1644
    %1646 = vst.msk [vmem:[#allocation5] sm:$0x1] %vm1632, %v1645
    %v1648 = vrot.slane %v819, 7
    %v1650 = vrot.slane %v1550, 6
    %v1652 = vsel %vm820, %v1648, %v1650
    %vm1653 = vcmask 156672
    %1654 = vst.msk [vmem:[#allocation6] sm:$0x3] %vm1653, %v1652
    // Predicated region
    $region58: #{tpu_custom_call.1} parent=1 // pred_check
      _
    $region59: #{tpu_custom_call.1} parent=1 // pred_check_branch
      %1656 = sbr.rel (0) target = $region61
    $region60: #{tpu_custom_call.1} parent=1 // pred_region
      %s1658 = ssub.s32 16, 16
      %1659 = vsyncadd [#allocation4], %s1658
      %s1661 = sshll.u32 [#allocation5], 4
      %s1662 = int_to_ptr.vmem [resolvable:$true] %s1661
      %1664 = dma.vmem_to_hbm [thread:$0]  %s1662, 16, %s13, [#allocation4]
    $region61: #{tpu_custom_call.1} parent=1 // pred_fallthru
      _
    // Predicated region
    $region62: #{tpu_custom_call.1} parent=1 // pred_check
      _
    $region63: #{tpu_custom_call.1} parent=1 // pred_check_branch
      %1666 = sbr.rel (0) target = $region65
    $region64: #{tpu_custom_call.1} parent=1 // pred_region
      %s1668 = ssub.s32 32, 32
      %1669 = vsyncadd [#allocation7], %s1668
      %s1671 = sshll.u32 [#allocation6], 4
      %s1672 = int_to_ptr.vmem [resolvable:$true] %s1671
      %1674 = dma.vmem_to_hbm [thread:$0]  %s1672, 32, %s14, [#allocation7]
    $region65: #{tpu_custom_call.1} parent=1 // pred_fallthru
      _
    // Predicated region
    $region66: #{tpu_custom_call.1} parent=1 // pred_check
      _
    $region67: #{tpu_custom_call.1} parent=1 // pred_check_branch
      %1676 = sbr.rel (0) target = $region69
    $region68: #{tpu_custom_call.1} parent=1 // pred_region
      %1677 = dma.done [#allocation4], 16
    $region69: #{tpu_custom_call.1} parent=1 // pred_fallthru
      _
    // Predicated region
    $region70: #{tpu_custom_call.1} parent=1 // pred_check
      _
    $region71: #{tpu_custom_call.1} parent=1 // pred_check_branch
      %1679 = sbr.rel (0) target = $region73
    $region72: #{tpu_custom_call.1} parent=1 // pred_region
      %1680 = dma.done [#allocation7], 32
    $region73: #{tpu_custom_call.1} parent=1 // pred_fallthru
      _
    %1681 = vsyncpa [#allocation3], 1
    %1682 = vsyncpa [#allocation4], 1
    %1683 = vsyncpa [#allocation7], 1

</llo_original>
